<compile_context>
chip_gen: v6e
topology: v6e:2x2x1
jax: 0.10.0
libtpu: 0.0.40
codegen_flags: <defaults>
</compile_context>

<pallas_src>
import functools
import math

import jax
import jax.numpy as jnp
from jax import lax
from jax.experimental import pallas as pl
from jax.experimental.pallas import tpu as pltpu


# -----------------------------------------------------------------------------
# Kernel 1: 3x3 conv (residual folded into the weights) + bias + LeakyReLU
#           + per-tile BatchNorm partial statistics.
# -----------------------------------------------------------------------------
def _resconv_kernel(x_ref, w_ref, b_ref, y_ref, st_ref, *, tile_h, width, slope):
    cols = x_ref.shape[-1]                 # 3 * Cin
    cout = y_ref.shape[-1]
    m = tile_h * width

    # Width-im2col'd halo tile: (1, tile_h+2, W, 3*Cin).  Each ky tap is a
    # contiguous row window -> layout-free reshape, dot has K = 3*Cin.
    acc = None
    for ky in range(3):
        tap = x_ref[0, pl.ds(ky, tile_h), :, :].reshape(m, cols)
        part = jnp.dot(tap, w_ref[ky], preferred_element_type=jnp.float32)
        acc = part if acc is None else acc + part
    acc = acc + b_ref[...]                 # residual + its bias already folded in

    # LeakyReLU(0.1)
    y = jnp.where(acc >= 0.0, acc, slope * acc)

    y_ref[...] = y.reshape(1, tile_h, width, cout).astype(y_ref.dtype)

    # Lane-dense BN partials: one [sum | sum-of-squares] row of width 2*Cout.
    s = jnp.sum(y, axis=0, keepdims=True)
    ss = jnp.sum(y * y, axis=0, keepdims=True)
    st_ref[...] = jnp.concatenate([s, ss], axis=-1).reshape(1, 1, 1, 2 * cout)


# -----------------------------------------------------------------------------
# Kernel 2: BatchNorm apply (y*scale + shift) fused with the NHWC->NCHW
#           output transpose (channel-major, lane-dense store).
# -----------------------------------------------------------------------------
def _bn_nchw_kernel(y_ref, sc_ref, sh_ref, o_ref):
    rows, width, c = y_ref.shape[1], y_ref.shape[2], y_ref.shape[3]
    yv = y_ref[...].reshape(rows * width, c)
    o = yv * sc_ref[...] + sh_ref[...]
    o_ref[...] = jnp.transpose(o, (1, 0)).reshape(1, c, rows * width)


# -----------------------------------------------------------------------------
# Tile pickers
# -----------------------------------------------------------------------------
def _pick_tile_h(h, w, target_m=256, max_m=1024):
    """Smallest divisor tile of H with tile*W >= target (capped by max_m)."""
    best = 1
    for t in range(1, h + 1):
        if h % t == 0 and t * w <= max_m:
            best = t
            if t * w >= target_m:
                break
    return best


def _pick_bn_rows(h, w, c, budget=4 << 20):
    """Biggest layout-valid row tile for the (HBM-bound) BN-apply kernel."""
    best = h                                   # whole image is always valid
    for t in range(1, h):
        if h % t == 0 and (t * w) % 128 == 0 and t * w * c * 4 <= budget:
            best = t
    if h * w * c * 4 <= budget:
        best = h
    return best


# -----------------------------------------------------------------------------
# Forward wrapper (torch NCHW in / NCHW out)
# -----------------------------------------------------------------------------
@functools.partial(jax.jit, static_argnames=("compute_dtype", "eps", "slope"))
def residual_conv_forward(x, params, compute_dtype=jnp.bfloat16,
                          eps=1e-5, slope=0.1):
    """x: (B, Cin, H, W) f32.  params: {"conv": (w3x3, b)[, "adjust": (w1x1, b)]}."""
    w, b = params["conv"]
    cout, cin = int(w.shape[0]), int(w.shape[1])
    has_adjust = "adjust" in params
    assert has_adjust == (cin != cout), "conv_adjust exists iff Cin != Cout"

    B, _, H, W = x.shape
    th = _pick_tile_h(H, W)
    nt = H // th

    # ---- Fold the residual path into the 3x3 weights/bias (exact in math):
    #      conv3x3(x,w)+b + conv1x1(x,wa)+ba == conv3x3(x, w')+b'
    #      with w'[:, :, 1, 1] += wa   (or += I for the identity residual).
    w = w.astype(jnp.float32)
    b = b.astype(jnp.float32)
    if has_adjust:
        wa, ba = params["adjust"]
        w = w.at[:, :, 1, 1].add(wa[:, :, 0, 0].astype(jnp.float32))
        b = b + ba.astype(jnp.float32)
    else:
        w = w.at[:, :, 1, 1].add(jnp.eye(cout, dtype=jnp.float32))

    # ---- Layout prep (one fused XLA chain): NCHW->NHWC, pad, width im2col,
    #      halo row tiles.  Last-axis order of xcol is kx-major then Cin.
    xh = jnp.transpose(x, (0, 2, 3, 1)).astype(compute_dtype)           # (B,H,W,Cin)
    xp = jnp.pad(xh, ((0, 0), (1, 1), (1, 1), (0, 0)))                  # (B,H+2,W+2,Cin)
    xcol = jnp.concatenate([xp[:, :, k:k + W, :] for k in range(3)], -1)  # (B,H+2,W,3Cin)
    xti = jnp.stack([xcol[:, i * th:i * th + th + 2] for i in range(nt)], axis=1)
    xti = xti.reshape(B * nt, th + 2, W, 3 * cin)   # halo tiles: VMEM ~ tile_h, not H

    wcol = jnp.stack(
        [jnp.transpose(w[:, :, ky, :], (2, 1, 0)).reshape(3 * cin, cout)
         for ky in range(3)]).astype(compute_dtype)                      # (3,3Cin,Cout)
    b2 = b.reshape(1, cout)

    kernel = functools.partial(_resconv_kernel, tile_h=th, width=W, slope=slope)
    y, st = pl.pallas_call(
        kernel,
        out_shape=(jax.ShapeDtypeStruct((B, H, W, cout), jnp.float32),
                   jax.ShapeDtypeStruct((B, nt, 1, 2 * cout), jnp.float32)),
        grid_spec=pltpu.PrefetchScalarGridSpec(
            num_scalar_prefetch=0,
            grid=(B, nt),
            in_specs=[
                pl.BlockSpec((1, th + 2, W, 3 * cin),
                             lambda bb, ii: (bb * nt + ii, 0, 0, 0)),
                pl.BlockSpec((3, 3 * cin, cout), lambda bb, ii: (0, 0, 0)),
                pl.BlockSpec((1, cout), lambda bb, ii: (0, 0)),
            ],
            out_specs=[
                pl.BlockSpec((1, th, W, cout), lambda bb, ii: (bb, ii, 0, 0)),
                pl.BlockSpec((1, 1, 1, 2 * cout), lambda bb, ii: (bb, ii, 0, 0)),
            ],
        ),
        compiler_params=pltpu.CompilerParams(
            dimension_semantics=("parallel", "parallel")),
    )(xti, wcol, b2)

    # ---- Tiny cross-tile BN stats reduction (plain JAX glue).
    n = float(B * H * W)
    mean = jnp.sum(st[..., :cout], axis=(0, 1, 2)) / n
    ex2 = jnp.sum(st[..., cout:], axis=(0, 1, 2)) / n
    var = jnp.maximum(ex2 - mean * mean, 0.0)
    # TODO(synk): switch to a shifted / two-pass variance if this feeds training
    # at scales where |mean| >> std.
    scale = lax.rsqrt(var + eps)            # BN gamma = 1 (fresh init)
    shift = -mean * scale                   # BN beta  = 0

    # ---- Kernel 2: BN apply + fused NHWC->NCHW transpose, large tiles.
    th2 = _pick_bn_rows(H, W, cout)
    nt2 = H // th2
    out3 = pl.pallas_call(
        _bn_nchw_kernel,
        out_shape=jax.ShapeDtypeStruct((B, cout, H * W), jnp.float32),
        grid_spec=pltpu.PrefetchScalarGridSpec(
            num_scalar_prefetch=0,
            grid=(B, nt2),
            in_specs=[
                pl.BlockSpec((1, th2, W, cout), lambda bb, ii: (bb, ii, 0, 0)),
                pl.BlockSpec((1, cout), lambda bb, ii: (0, 0)),
                pl.BlockSpec((1, cout), lambda bb, ii: (0, 0)),
            ],
            out_specs=pl.BlockSpec((1, cout, th2 * W), lambda bb, ii: (bb, 0, ii)),
        ),
        compiler_params=pltpu.CompilerParams(
            dimension_semantics=("parallel", "parallel")),
    )(y, scale.reshape(1, cout), shift.reshape(1, cout))

    # Minor-dim split only -> free reshape; output is NCHW like the torch module.
    return out3.reshape(B, cout, H, W)


# -----------------------------------------------------------------------------
# Plain-JAX reference (mirrors the PyTorch forward) for the numerical check.
# compute_dtype matches the kernel's input/weight quantization; accum is f32.
# -----------------------------------------------------------------------------
def residual_conv_ref(x, params, compute_dtype=jnp.float32, eps=1e-5, slope=0.1):
    w, b = params["conv"]
    dn = ("NCHW", "OIHW", "NCHW")
    xc = x.astype(compute_dtype)
    out = lax.conv_general_dilated(xc, w.astype(compute_dtype), (1, 1),
                                   ((1, 1), (1, 1)), dimension_numbers=dn,
                                   preferred_element_type=jnp.float32)
    out = out + b.astype(jnp.float32)[None, :, None, None]
    if x.shape[1] != w.shape[0]:
        wa, ba = params["adjust"]
        res = lax.conv_general_dilated(xc, wa.astype(compute_dtype), (1, 1),
                                       ((0, 0), (0, 0)), dimension_numbers=dn,
                                       preferred_element_type=jnp.float32)
        res = res + ba.astype(jnp.float32)[None, :, None, None]
    else:
        res = xc.astype(jnp.float32)
    out = out + res
    out = jnp.where(out >= 0.0, out, slope * out)
    mean = jnp.mean(out, axis=(0, 2, 3), keepdims=True)
    var = jnp.mean((out - mean) ** 2, axis=(0, 2, 3), keepdims=True)
    return (out - mean) * lax.rsqrt(var + eps)


# -----------------------------------------------------------------------------
if __name__ == "__main__":
    key = jax.random.PRNGKey(0)
    kx1, kp1, kp1a, kx2, kp2 = jax.random.split(key, 5)

    def conv_init(kk, cout, cin, ksz):
        kw_, kb_ = jax.random.split(kk)
        bound = math.sqrt(1.0 / (cin * ksz * ksz))
        w = jax.random.uniform(kw_, (cout, cin, ksz, ksz), jnp.float32, -bound, bound)
        b = jax.random.uniform(kb_, (cout,), jnp.float32, -bound, bound)
        return w, b

    # Case 1: Cin != Cout -> 1x1 conv_adjust residual, folded into the weights.
    B, Cin, Cout, H, W = 2, 64, 128, 32, 16
    x = jax.random.normal(kx1, (B, Cin, H, W), jnp.float32)
    params = {"conv": conv_init(kp1, Cout, Cin, 3),
              "adjust": conv_init(kp1a, Cout, Cin, 1)}

    # 1a: strict f32 check of the full pipeline (incl. the adjust-weight fold).
    out = jax.block_until_ready(
        residual_conv_forward(x, params, compute_dtype=jnp.float32))
    ref = residual_conv_ref(x, params, compute_dtype=jnp.float32)
    assert out.shape == (B, Cout, H, W)
    assert bool(jnp.all(jnp.isfinite(out)))
    assert bool(jnp.allclose(out, ref, atol=2e-3, rtol=2e-3))

    # 1b: production configuration -- bf16 image/weights, f32 accumulation.
    # Tolerance reflects bf16 quantization of the folded centre-tap weights;
    # accumulation and the whole epilogue stay f32.
    out_bf = jax.block_until_ready(
        residual_conv_forward(x, params, compute_dtype=jnp.bfloat16))
    ref_bf = residual_conv_ref(x, params, compute_dtype=jnp.bfloat16)
    assert bool(jnp.all(jnp.isfinite(out_bf)))
    assert bool(jnp.allclose(out_bf, ref_bf, atol=2e-2, rtol=2e-2))

    # Case 2: Cin == Cout -> identity residual (folded as +I), strict f32.
    Cin2 = Cout2 = 128
    x2 = jax.random.normal(kx2, (B, Cin2, H, W), jnp.float32)
    params2 = {"conv": conv_init(kp2, Cout2, Cin2, 3)}
    out2 = jax.block_until_ready(
        residual_conv_forward(x2, params2, compute_dtype=jnp.float32))
    ref2 = residual_conv_ref(x2, params2, compute_dtype=jnp.float32)
    assert out2.shape == (B, Cout2, H, W)
    assert bool(jnp.all(jnp.isfinite(out2)))
    assert bool(jnp.allclose(out2, ref2, atol=2e-3, rtol=2e-3))

    print("KERNEL_OK")
</pallas_src>

<mosaic_0001>
module attributes {stable_mosaic.version = 11 : i64} {
  func.func @_resconv_kernel(%arg0: i32, %arg1: i32, %arg2: memref<1x18x16x192xf32, #tpu.memory_space<vmem>>, %arg3: memref<3x192x128xf32, #tpu.memory_space<vmem>>, %arg4: memref<1x128xf32, #tpu.memory_space<vmem>>, %arg5: memref<1x16x16x128xf32, #tpu.memory_space<vmem>>, %arg6: memref<1x1x1x256xf32, #tpu.memory_space<vmem>>) attributes {dimension_semantics = [#tpu.dimension_semantics<parallel>, #tpu.dimension_semantics<parallel>], iteration_bounds = array<i64: 2, 2>, scalar_prefetch = 0 : i64, scratch_operands = 0 : i64, tpu.core_type = #tpu.core_type<tc>, window_params = [{transform_indices = @transform_0, window_bounds = array<i64: 1, 18, 16, 192>}, {pipeline_mode = #tpu.pipeline_mode<synchronous>, transform_indices = @transform_1, window_bounds = array<i64: 3, 192, 128>}, {pipeline_mode = #tpu.pipeline_mode<synchronous>, transform_indices = @transform_2, window_bounds = array<i64: 1, 128>}, {transform_indices = @transform_3, window_bounds = array<i64: 1, 16, 16, 128>}, {transform_indices = @transform_4, window_bounds = array<i64: 1, 1, 1, 256>}]} {
    %c0 = arith.constant 0 : index
    %c0_0 = arith.constant 0 : index
    %c0_1 = arith.constant 0 : index
    %c0_2 = arith.constant 0 : index
    %0 = vector.load %arg2[%c0, %c0_0, %c0_1, %c0_2] : memref<1x18x16x192xf32, #tpu.memory_space<vmem>>, vector<1x16x16x192xf32>
    %1 = vector.shape_cast %0 : vector<1x16x16x192xf32> to vector<16x16x192xf32>
    %2 = vector.shape_cast %1 : vector<16x16x192xf32> to vector<256x192xf32>
    %c0_3 = arith.constant 0 : index
    %c0_4 = arith.constant 0 : index
    %c0_5 = arith.constant 0 : index
    %3 = vector.load %arg3[%c0_3, %c0_4, %c0_5] : memref<3x192x128xf32, #tpu.memory_space<vmem>>, vector<1x192x128xf32>
    %4 = vector.shape_cast %3 : vector<1x192x128xf32> to vector<192x128xf32>
    %cst = arith.constant dense<0.000000e+00> : vector<256x128xf32>
    %5 = tpu.matmul %2, %4, %cst {dimension_numbers = #tpu.dot_dimension_numbers<[1], [0], [0], [1], [0, 0, 1, 1], [], []>} : vector<256x192xf32>, vector<192x128xf32>, vector<256x128xf32> -> vector<256x128xf32>
    %c0_6 = arith.constant 0 : index
    %c1 = arith.constant 1 : index
    %c0_7 = arith.constant 0 : index
    %c0_8 = arith.constant 0 : index
    %6 = vector.load %arg2[%c0_6, %c1, %c0_7, %c0_8] : memref<1x18x16x192xf32, #tpu.memory_space<vmem>>, vector<1x16x16x192xf32>
    %7 = vector.shape_cast %6 : vector<1x16x16x192xf32> to vector<16x16x192xf32>
    %8 = vector.shape_cast %7 : vector<16x16x192xf32> to vector<256x192xf32>
    %c1_9 = arith.constant 1 : index
    %c0_10 = arith.constant 0 : index
    %c0_11 = arith.constant 0 : index
    %9 = vector.load %arg3[%c1_9, %c0_10, %c0_11] : memref<3x192x128xf32, #tpu.memory_space<vmem>>, vector<1x192x128xf32>
    %10 = vector.shape_cast %9 : vector<1x192x128xf32> to vector<192x128xf32>
    %cst_12 = arith.constant dense<0.000000e+00> : vector<256x128xf32>
    %11 = tpu.matmul %8, %10, %cst_12 {dimension_numbers = #tpu.dot_dimension_numbers<[1], [0], [0], [1], [0, 0, 1, 1], [], []>} : vector<256x192xf32>, vector<192x128xf32>, vector<256x128xf32> -> vector<256x128xf32>
    %12 = arith.addf %5, %11 : vector<256x128xf32>
    %c0_13 = arith.constant 0 : index
    %c2 = arith.constant 2 : index
    %c0_14 = arith.constant 0 : index
    %c0_15 = arith.constant 0 : index
    %13 = vector.load %arg2[%c0_13, %c2, %c0_14, %c0_15] : memref<1x18x16x192xf32, #tpu.memory_space<vmem>>, vector<1x16x16x192xf32>
    %14 = vector.shape_cast %13 : vector<1x16x16x192xf32> to vector<16x16x192xf32>
    %15 = vector.shape_cast %14 : vector<16x16x192xf32> to vector<256x192xf32>
    %c2_16 = arith.constant 2 : index
    %c0_17 = arith.constant 0 : index
    %c0_18 = arith.constant 0 : index
    %16 = vector.load %arg3[%c2_16, %c0_17, %c0_18] : memref<3x192x128xf32, #tpu.memory_space<vmem>>, vector<1x192x128xf32>
    %17 = vector.shape_cast %16 : vector<1x192x128xf32> to vector<192x128xf32>
    %cst_19 = arith.constant dense<0.000000e+00> : vector<256x128xf32>
    %18 = tpu.matmul %15, %17, %cst_19 {dimension_numbers = #tpu.dot_dimension_numbers<[1], [0], [0], [1], [0, 0, 1, 1], [], []>} : vector<256x192xf32>, vector<192x128xf32>, vector<256x128xf32> -> vector<256x128xf32>
    %19 = arith.addf %12, %18 : vector<256x128xf32>
    %c0_20 = arith.constant 0 : index
    %c0_21 = arith.constant 0 : index
    %20 = vector.load %arg4[%c0_20, %c0_21] : memref<1x128xf32, #tpu.memory_space<vmem>>, vector<1x128xf32>
    %21 = vector.broadcast %20 : vector<1x128xf32> to vector<256x128xf32>
    %22 = arith.addf %19, %21 : vector<256x128xf32>
    %cst_22 = arith.constant 0.000000e+00 : f32
    %23 = vector.broadcast %cst_22 : f32 to vector<256x128xf32>
    %24 = arith.cmpf oge, %22, %23 : vector<256x128xf32>
    %cst_23 = arith.constant 1.000000e-01 : f32
    %25 = vector.broadcast %cst_23 : f32 to vector<256x128xf32>
    %26 = arith.mulf %25, %22 : vector<256x128xf32>
    %27 = arith.select %24, %22, %26 : vector<256x128xi1>, vector<256x128xf32>
    %28 = vector.shape_cast %27 : vector<256x128xf32> to vector<1x16x16x128xf32>
    %c0_24 = arith.constant 0 : index
    %c0_25 = arith.constant 0 : index
    %c0_26 = arith.constant 0 : index
    %c0_27 = arith.constant 0 : index
    %29 = vector.load %arg5[%c0_24, %c0_25, %c0_26, %c0_27] : memref<1x16x16x128xf32, #tpu.memory_space<vmem>>, vector<1x16x16x128xf32>
    tpu.vector_store %arg5[%c0_24, %c0_25, %c0_26, %c0_27], %28 {strides = array<i32>} : memref<1x16x16x128xf32, #tpu.memory_space<vmem>>, vector<1x16x16x128xf32>,
    %cst_28 = arith.constant dense<0.000000e+00> : vector<128xf32>
    %30 = vector.multi_reduction <add>, %27, %cst_28 [0] : vector<256x128xf32> to vector<128xf32>
    %31 = vector.shape_cast %30 : vector<128xf32> to vector<1x128xf32>
    %32 = arith.mulf %27, %27 : vector<256x128xf32>
    %cst_29 = arith.constant dense<0.000000e+00> : vector<128xf32>
    %33 = vector.multi_reduction <add>, %32, %cst_29 [0] : vector<256x128xf32> to vector<128xf32>
    %34 = vector.shape_cast %33 : vector<128xf32> to vector<1x128xf32>
    %35 = tpu.concatenate %31, %34 in 1 : vector<1x128xf32>, vector<1x128xf32> -> vector<1x256xf32>
    %36 = vector.shape_cast %35 : vector<1x256xf32> to vector<1x1x1x256xf32>
    %c0_30 = arith.constant 0 : index
    %c0_31 = arith.constant 0 : index
    %c0_32 = arith.constant 0 : index
    %c0_33 = arith.constant 0 : index
    %37 = vector.load %arg6[%c0_30, %c0_31, %c0_32, %c0_33] : memref<1x1x1x256xf32, #tpu.memory_space<vmem>>, vector<1x1x1x256xf32>
    tpu.vector_store %arg6[%c0_30, %c0_31, %c0_32, %c0_33], %36 {strides = array<i32>} : memref<1x1x1x256xf32, #tpu.memory_space<vmem>>, vector<1x1x1x256xf32>,
    return
  }
  func.func @transform_0(%arg0: i32, %arg1: i32) -> (i32, i32, i32, i32) {
    %c2_i32 = arith.constant 2 : i32
    %0 = arith.muli %arg0, %c2_i32 : i32
    %1 = arith.addi %0, %arg1 : i32
    %c0_i32 = arith.constant 0 : i32
    %c0_i32_0 = arith.constant 0 : i32
    %c0_i32_1 = arith.constant 0 : i32
    %c0_i32_2 = arith.constant 0 : i32
    return %1, %c0_i32, %c0_i32_0, %c0_i32_1 : i32, i32, i32, i32
  }
  func.func @transform_1(%arg0: i32, %arg1: i32) -> (i32, i32, i32) {
    %c0_i32 = arith.constant 0 : i32
    %c0_i32_0 = arith.constant 0 : i32
    %c0_i32_1 = arith.constant 0 : i32
    %c0_i32_2 = arith.constant 0 : i32
    return %c0_i32, %c0_i32_0, %c0_i32_1 : i32, i32, i32
  }
  func.func @transform_2(%arg0: i32, %arg1: i32) -> (i32, i32) {
    %c0_i32 = arith.constant 0 : i32
    %c0_i32_0 = arith.constant 0 : i32
    %c0_i32_1 = arith.constant 0 : i32
    return %c0_i32, %c0_i32_0 : i32, i32
  }
  func.func @transform_3(%arg0: i32, %arg1: i32) -> (i32, i32, i32, i32) {
    %c0_i32 = arith.constant 0 : i32
    %c0_i32_0 = arith.constant 0 : i32
    %c0_i32_1 = arith.constant 0 : i32
    return %arg0, %arg1, %c0_i32, %c0_i32_0 : i32, i32, i32, i32
  }
  func.func @transform_4(%arg0: i32, %arg1: i32) -> (i32, i32, i32, i32) {
    %c0_i32 = arith.constant 0 : i32
    %c0_i32_0 = arith.constant 0 : i32
    %c0_i32_1 = arith.constant 0 : i32
    return %arg0, %arg1, %c0_i32, %c0_i32_0 : i32, i32, i32, i32
  }
}

module attributes {stable_mosaic.version = 11 : i64} {
  func.func @_bn_nchw_kernel(%arg0: i32, %arg1: i32, %arg2: memref<1x32x16x128xf32, #tpu.memory_space<vmem>>, %arg3: memref<1x128xf32, #tpu.memory_space<vmem>>, %arg4: memref<1x128xf32, #tpu.memory_space<vmem>>, %arg5: memref<1x128x512xf32, #tpu.memory_space<vmem>>) attributes {dimension_semantics = [#tpu.dimension_semantics<parallel>, #tpu.dimension_semantics<parallel>], iteration_bounds = array<i64: 2, 1>, scalar_prefetch = 0 : i64, scratch_operands = 0 : i64, tpu.core_type = #tpu.core_type<tc>, window_params = [{transform_indices = @transform_0, window_bounds = array<i64: 1, 32, 16, 128>}, {pipeline_mode = #tpu.pipeline_mode<synchronous>, transform_indices = @transform_1, window_bounds = array<i64: 1, 128>}, {pipeline_mode = #tpu.pipeline_mode<synchronous>, transform_indices = @transform_2, window_bounds = array<i64: 1, 128>}, {transform_indices = @transform_3, window_bounds = array<i64: 1, 128, 512>}]} {
    %c0 = arith.constant 0 : index
    %c0_0 = arith.constant 0 : index
    %c0_1 = arith.constant 0 : index
    %c0_2 = arith.constant 0 : index
    %0 = vector.load %arg2[%c0, %c0_0, %c0_1, %c0_2] : memref<1x32x16x128xf32, #tpu.memory_space<vmem>>, vector<1x32x16x128xf32>
    %1 = vector.shape_cast %0 : vector<1x32x16x128xf32> to vector<512x128xf32>
    %c0_3 = arith.constant 0 : index
    %c0_4 = arith.constant 0 : index
    %2 = vector.load %arg3[%c0_3, %c0_4] : memref<1x128xf32, #tpu.memory_space<vmem>>, vector<1x128xf32>
    %3 = vector.broadcast %2 : vector<1x128xf32> to vector<512x128xf32>
    %4 = arith.mulf %1, %3 : vector<512x128xf32>
    %c0_5 = arith.constant 0 : index
    %c0_6 = arith.constant 0 : index
    %5 = vector.load %arg4[%c0_5, %c0_6] : memref<1x128xf32, #tpu.memory_space<vmem>>, vector<1x128xf32>
    %6 = vector.broadcast %5 : vector<1x128xf32> to vector<512x128xf32>
    %7 = arith.addf %4, %6 : vector<512x128xf32>
    %8 = tpu.transpose %7, [1, 0] : vector<512x128xf32> -> vector<128x512xf32>
    %9 = vector.shape_cast %8 : vector<128x512xf32> to vector<1x128x512xf32>
    %c0_7 = arith.constant 0 : index
    %c0_8 = arith.constant 0 : index
    %c0_9 = arith.constant 0 : index
    %10 = vector.load %arg5[%c0_7, %c0_8, %c0_9] : memref<1x128x512xf32, #tpu.memory_space<vmem>>, vector<1x128x512xf32>
    tpu.vector_store %arg5[%c0_7, %c0_8, %c0_9], %9 {strides = array<i32>} : memref<1x128x512xf32, #tpu.memory_space<vmem>>, vector<1x128x512xf32>,
    return
  }
  func.func @transform_0(%arg0: i32, %arg1: i32) -> (i32, i32, i32, i32) {
    %c0_i32 = arith.constant 0 : i32
    %c0_i32_0 = arith.constant 0 : i32
    %c0_i32_1 = arith.constant 0 : i32
    return %arg0, %arg1, %c0_i32, %c0_i32_0 : i32, i32, i32, i32
  }
  func.func @transform_1(%arg0: i32, %arg1: i32) -> (i32, i32) {
    %c0_i32 = arith.constant 0 : i32
    %c0_i32_0 = arith.constant 0 : i32
    %c0_i32_1 = arith.constant 0 : i32
    return %c0_i32, %c0_i32_0 : i32, i32
  }
  func.func @transform_2(%arg0: i32, %arg1: i32) -> (i32, i32) {
    %c0_i32 = arith.constant 0 : i32
    %c0_i32_0 = arith.constant 0 : i32
    %c0_i32_1 = arith.constant 0 : i32
    return %c0_i32, %c0_i32_0 : i32, i32
  }
  func.func @transform_3(%arg0: i32, %arg1: i32) -> (i32, i32, i32) {
    %c0_i32 = arith.constant 0 : i32
    %c0_i32_0 = arith.constant 0 : i32
    return %arg0, %c0_i32, %arg1 : i32, i32, i32
  }
}

</mosaic_0001>

<llo_original>
// kernel: residual_conv_forward.3
$region0: #{residual_conv_forward.3}
  #allocation0 [shape = 'u32[]', space=smem, size = 0x4, offset = 0x4, fixed_abs, tag = 'smem constant byte address 0x4 - core index']
  #allocation1 [shape = 'u32[144,128]{1,0:T(1,128)}', space=vmem, size = 0x12000, scoped, tag = 'internal scratch']
  %s0 = inlined_call_operand.vmem [shape: f32[2,32,16,128], index: 0, kind: input, shape index: {}]
  %s1 = inlined_call_operand.vmem [shape: f32[1,128], index: 1, kind: input, shape index: {}]
  %s2 = inlined_call_operand.vmem [shape: f32[1,128], index: 2, kind: input, shape index: {}]
  %s3 = inlined_call_operand.vmem [shape: f32[2,128,512], index: 3, kind: output, shape index: {}]
  %s4 = sld [smem:[#allocation0]]
  $region45: #{residual_conv_forward.3} parent=0
    _
  %s6 = ssub.s32 1, %s4
  %s7 = scalar_select 0, %s6, %s4
  loop: start=0, step=1, limit=4
  $region2: #{residual_conv_forward.3} parent=0 // loop_pre_header
    _
  $region3: #{residual_conv_forward.3} parent=0 // loop_header
    %s9 = sphi 0, %s13
    %p10 = scmp.ge.s32.totalorder %s9, 4
    %s16 = sphi 0, %s28
    %s17 = sphi 0, %s24
    %s18 = sphi 0, %s16
    %s19 = sphi 0, %s17
    %s20 = sphi 0, %s18
    %s21 = sphi 0, %s19
    %s33 = sphi 0, %s35
    %s36 = sphi 0, %s33
    %s37 = sphi 0, %s36
    %s53 = sphi 0, %s37
    %s57 = sphi 0, %s57
    %s59 = sphi 0, %s57
    %s60 = sphi 0, %s59
    %s74 = sphi 0, %s60
    %s78 = sphi 0, %s78
    %s80 = sphi 0, %s78
    %s81 = sphi 0, %s80
    %s95 = sphi 0, %s81
    %s103 = sphi 0, %s105
    %s106 = sphi 0, %s103
    %s107 = sphi 0, %s106
    %s123 = sphi 0, %s107
  $region4: #{residual_conv_forward.3} parent=0 // loop_header_branch
    %12 = sbr.rel (%p10) target = $region8
  $region5: #{residual_conv_forward.3} parent=0 // loop_body
    %s14 = ssub.s32 %s9, 1
    %s15 = ssub.s32 %s9, 2
    %s22 = sadd.s32 1, %s17
    %p23 = scmp.ge.s32.totalorder %s22, 1
    %s24 = scalar_select %p23, 0, %s22
    %s25 = sadd.s32 1, %s16
    %s26 = scalar_select %p23, %s25, %s16
    %p27 = scmp.ge.s32.totalorder %s26, 2
    %s28 = scalar_select %p27, 0, %s26
    %s29 = ssub.s32 %s16, %s28
    %s30 = ssub.s32 %s17, %s24
    %s31 = sor.u32 %s29, %s30
    %p32 = scmp.eq.s32.totalorder %s31, 0
    %s34 = sadd.s32 %s33, 1
    %s35 = scalar_select %p32, %s33, %s34
    %p38 = pneg %p32
    %p39 = scmp.eq.s32.totalorder %s9, 1
    %p40 = por %p38, %p39
    %p41 = scmp.ne.s32.totalorder %s33, %s36
    %p42 = scmp.eq.s32.totalorder %s9, 0
    %p43 = por %p41, %p42
    %p44 = scmp.ne.s32.totalorder %s33, %s36
    %p45 = scmp.eq.s32.totalorder %s14, 1
    %p46 = por %p44, %p45
    %p47 = scmp.ne.s32.totalorder %s36, %s37
    %p48 = scmp.eq.s32.totalorder %s14, 0
    %p49 = por %p47, %p48
    %p50 = scmp.ne.s32.totalorder %s36, %s37
    %p51 = scmp.eq.s32.totalorder %s15, 1
    %p52 = por %p50, %p51
    %p54 = scmp.ne.s32.totalorder %s37, %s53
    %p55 = scmp.eq.s32.totalorder %s15, 0
    %p56 = por %p54, %p55
    %s58 = sadd.s32 %s57, 1
    %p61 = scmp.eq.s32.totalorder %s9, 1
    %p62 = scmp.ne.s32.totalorder %s57, %s59
    %p63 = scmp.eq.s32.totalorder %s9, 0
    %p64 = por %p62, %p63
    %p65 = scmp.ne.s32.totalorder %s57, %s59
    %p66 = scmp.eq.s32.totalorder %s14, 1
    %p67 = por %p65, %p66
    %p68 = scmp.ne.s32.totalorder %s59, %s60
    %p69 = scmp.eq.s32.totalorder %s14, 0
    %p70 = por %p68, %p69
    %p71 = scmp.ne.s32.totalorder %s59, %s60
    %p72 = scmp.eq.s32.totalorder %s15, 1
    %p73 = por %p71, %p72
    %p75 = scmp.ne.s32.totalorder %s60, %s74
    %p76 = scmp.eq.s32.totalorder %s15, 0
    %p77 = por %p75, %p76
    %s79 = sadd.s32 %s78, 1
    %p82 = scmp.eq.s32.totalorder %s9, 1
    %p83 = scmp.ne.s32.totalorder %s78, %s80
    %p84 = scmp.eq.s32.totalorder %s9, 0
    %p85 = por %p83, %p84
    %p86 = scmp.ne.s32.totalorder %s78, %s80
    %p87 = scmp.eq.s32.totalorder %s14, 1
    %p88 = por %p86, %p87
    %p89 = scmp.ne.s32.totalorder %s80, %s81
    %p90 = scmp.eq.s32.totalorder %s14, 0
    %p91 = por %p89, %p90
    %p92 = scmp.ne.s32.totalorder %s80, %s81
    %p93 = scmp.eq.s32.totalorder %s15, 1
    %p94 = por %p92, %p93
    %p96 = scmp.ne.s32.totalorder %s81, %s95
    %p97 = scmp.eq.s32.totalorder %s15, 0
    %p98 = por %p96, %p97
    %s99 = ssub.s32 %s16, %s28
    %s100 = ssub.s32 %s17, %s24
    %s101 = sor.u32 %s99, %s100
    %p102 = scmp.eq.s32.totalorder %s101, 0
    %s104 = sadd.s32 %s103, 1
    %s105 = scalar_select %p102, %s103, %s104
    %p108 = pneg %p102
    %p109 = scmp.eq.s32.totalorder %s9, 1
    %p110 = por %p108, %p109
    %p111 = scmp.ne.s32.totalorder %s103, %s106
    %p112 = scmp.eq.s32.totalorder %s9, 0
    %p113 = por %p111, %p112
    %p114 = scmp.ne.s32.totalorder %s103, %s106
    %p115 = scmp.eq.s32.totalorder %s14, 1
    %p116 = por %p114, %p115
    %p117 = scmp.ne.s32.totalorder %s106, %s107
    %p118 = scmp.eq.s32.totalorder %s14, 0
    %p119 = por %p117, %p118
    %p120 = scmp.ne.s32.totalorder %s106, %s107
    %p121 = scmp.eq.s32.totalorder %s15, 1
    %p122 = por %p120, %p121
    %p124 = scmp.ne.s32.totalorder %s107, %s123
    %p125 = scmp.eq.s32.totalorder %s15, 0
    %p126 = por %p124, %p125
    %p127 = scmp.le.s32.totalorder 1, %s9
    %p128 = scmp.lt.s32.totalorder %s9, 3
    %p129 = pnand %p127, %p128
    %p130 = pneg %p129
    // Predicated region
    $region9: #{residual_conv_forward.3} parent=5 // pred_check
      _
    $region10: #{residual_conv_forward.3} parent=5 // pred_check_branch
      %132 = sbr.rel (%p129) target = $region12
    $region11: #{residual_conv_forward.3} parent=5 // pred_region
      %s133 = ssub.s32 %s9, 1
      // Predicated region
      $region13: #{residual_conv_forward.3} parent=11 // pred_check
        %p134 = pneg %p70
      $region14: #{residual_conv_forward.3} parent=11 // pred_check_branch
        %136 = sbr.rel (%p134) target = $region16
      $region15: #{residual_conv_forward.3} parent=11 // pred_region
        _
      $region16: #{residual_conv_forward.3} parent=11 // pred_fallthru
        _
      // Predicated region
      $region17: #{residual_conv_forward.3} parent=11 // pred_check
        %p137 = pneg %p91
      $region18: #{residual_conv_forward.3} parent=11 // pred_check_branch
        %139 = sbr.rel (%p137) target = $region20
      $region19: #{residual_conv_forward.3} parent=11 // pred_region
        _
      $region20: #{residual_conv_forward.3} parent=11 // pred_fallthru
        _
    $region12: #{residual_conv_forward.3} parent=5 // pred_fallthru
      _
    %p140 = scmp.lt.s32.totalorder %s9, 2
    // Predicated region
    $region21: #{residual_conv_forward.3} parent=5 // pred_check
      %p141 = pneg %p140
    $region22: #{residual_conv_forward.3} parent=5 // pred_check_branch
      %143 = sbr.rel (%p141) target = $region24
    $region23: #{residual_conv_forward.3} parent=5 // pred_region
      // Predicated region
      $region25: #{residual_conv_forward.3} parent=23 // pred_check
        %p144 = pneg %p43
      $region26: #{residual_conv_forward.3} parent=23 // pred_check_branch
        %146 = sbr.rel (%p144) target = $region28
      $region27: #{residual_conv_forward.3} parent=23 // pred_region
        %s147 = smul.u32 32, %s17
        %p148 = scmp.lt.s32.totalorder %s16, 1
        %s149 = scalar_select %p148, %s16, 1
        %p150 = scmp.lt.s32.totalorder %s147, 31
        %s151 = scalar_select %p150, %s147, 31
        %s152 = smul.addr %s151, 2
        %s153 = smul.addr %s149, 64
        %s154 = sadd.s32 %s152, %s153
        %s155 = smul.addr %s154, 8
        %s156 = scalar_lea.vmem %s0, %s155
        %s157 = smul.u32 32, %s17
      $region28: #{residual_conv_forward.3} parent=23 // pred_fallthru
        _
    $region24: #{residual_conv_forward.3} parent=5 // pred_fallthru
      _
    %p158 = scmp.le.s32.totalorder 1, %s9
    %p159 = scmp.lt.s32.totalorder %s9, 3
    %p160 = pnand %p158, %p159
    %p161 = pneg %p160
    // Predicated region
    $region29: #{residual_conv_forward.3} parent=5 // pred_check
      _
    $region30: #{residual_conv_forward.3} parent=5 // pred_check_branch
      %163 = sbr.rel (%p160) target = $region32
    $region31: #{residual_conv_forward.3} parent=5 // pred_region
      %s164 = ssub.s32 %s9, 1
      %s165 = smul.u32 32, %s19
      %p166 = scmp.lt.s32.totalorder %s18, 1
      %s167 = scalar_select %p166, %s18, 1
      %p168 = scmp.lt.s32.totalorder %s165, 31
      %s169 = scalar_select %p168, %s165, 31
      %s170 = smul.addr %s169, 2
      %s171 = smul.addr %s167, 64
      %s172 = sadd.s32 %s170, %s171
      %s173 = smul.addr %s172, 8
      %s174 = scalar_lea.vmem %s0, %s173
      %p175 = pneg %p49
      %p176 = pneg %p46
      %p177 = pneg %p70
      %p178 = pneg %p67
      %p179 = pneg %p91
      %p180 = pneg %p88
      %p181 = pneg %p119
      %p182 = pneg %p116
      %s183 = smul.u32 4, %s19
      %p184 = scmp.lt.s32.totalorder %s18, 1
      %s185 = scalar_select %p184, %s18, 1
      %p186 = scmp.lt.s32.totalorder %s183, 3
      %s187 = scalar_select %p186, %s183, 3
      %s188 = smul.addr %s185, 64
      %s189 = sadd.s32 %s187, %s188
      %s190 = smul.addr %s189, 8
      %s191 = scalar_lea.vmem %s3, %s190
      %s192 = smul.u32 32, %s19
      %p193 = scmp.lt.s32.totalorder %s18, 1
      %s194 = scalar_select %p193, %s18, 1
      %p195 = scmp.lt.s32.totalorder %s192, 31
      %s196 = scalar_select %p195, %s192, 31
      %s197 = smul.addr %s196, 2
      %s198 = smul.addr %s194, 64
      %s199 = sadd.s32 %s197, %s198
      %s200 = smul.addr %s199, 8
      %s201 = scalar_lea.vmem %s0, %s200
      %s202 = smul.u32 32, %s19
      %s203 = smul.u32 4, %s19
      %p204 = scmp.lt.s32.totalorder %s18, 1
      %s205 = scalar_select %p204, %s18, 1
      %p206 = scmp.lt.s32.totalorder %s203, 3
      %s207 = scalar_select %p206, %s203, 3
      %s208 = smul.addr %s205, 64
      %s209 = sadd.s32 %s207, %s208
      %s210 = smul.addr %s209, 8
      %s211 = scalar_lea.vmem %s3, %s210
      %s212 = smul.u32 4, %s19
      %v213 = vld [vmem:[%s201] sm:$0xff]
      %v214 = vld [vmem:[%s201 + $0x8] sm:$0xff]
      %v215 = vld [vmem:[%s201 + $0x10] sm:$0xff]
      %v216 = vld [vmem:[%s201 + $0x18] sm:$0xff]
      %v217 = vld [vmem:[%s201 + $0x20] sm:$0xff]
      %v218 = vld [vmem:[%s201 + $0x28] sm:$0xff]
      %v219 = vld [vmem:[%s201 + $0x30] sm:$0xff]
      %v220 = vld [vmem:[%s201 + $0x38] sm:$0xff]
      %v221 = vld [vmem:[%s201 + $0x40] sm:$0xff]
      %v222 = vld [vmem:[%s201 + $0x48] sm:$0xff]
      %v223 = vld [vmem:[%s201 + $0x50] sm:$0xff]
      %v224 = vld [vmem:[%s201 + $0x58] sm:$0xff]
      %v225 = vld [vmem:[%s201 + $0x60] sm:$0xff]
      %v226 = vld [vmem:[%s201 + $0x68] sm:$0xff]
      %v227 = vld [vmem:[%s201 + $0x70] sm:$0xff]
      %v228 = vld [vmem:[%s201 + $0x78] sm:$0xff]
      %v229 = vld [vmem:[%s201 + $0x80] sm:$0xff]
      %v230 = vld [vmem:[%s201 + $0x88] sm:$0xff]
      %v231 = vld [vmem:[%s201 + $0x90] sm:$0xff]
      %v232 = vld [vmem:[%s201 + $0x98] sm:$0xff]
      %v233 = vld [vmem:[%s201 + $0xa0] sm:$0xff]
      %v234 = vld [vmem:[%s201 + $0xa8] sm:$0xff]
      %v235 = vld [vmem:[%s201 + $0xb0] sm:$0xff]
      %v236 = vld [vmem:[%s201 + $0xb8] sm:$0xff]
      %v237 = vld [vmem:[%s201 + $0xc0] sm:$0xff]
      %v238 = vld [vmem:[%s201 + $0xc8] sm:$0xff]
      %v239 = vld [vmem:[%s201 + $0xd0] sm:$0xff]
      %v240 = vld [vmem:[%s201 + $0xd8] sm:$0xff]
      %v241 = vld [vmem:[%s201 + $0xe0] sm:$0xff]
      %v242 = vld [vmem:[%s201 + $0xe8] sm:$0xff]
      %v243 = vld [vmem:[%s201 + $0xf0] sm:$0xff]
      %v244 = vld [vmem:[%s201 + $0xf8] sm:$0xff]
      %v245 = vld [vmem:[%s201 + $0x100] sm:$0xff]
      %v246 = vld [vmem:[%s201 + $0x108] sm:$0xff]
      %v247 = vld [vmem:[%s201 + $0x110] sm:$0xff]
      %v248 = vld [vmem:[%s201 + $0x118] sm:$0xff]
      %v249 = vld [vmem:[%s201 + $0x120] sm:$0xff]
      %v250 = vld [vmem:[%s201 + $0x128] sm:$0xff]
      %v251 = vld [vmem:[%s201 + $0x130] sm:$0xff]
      %v252 = vld [vmem:[%s201 + $0x138] sm:$0xff]
      %v253 = vld [vmem:[%s201 + $0x140] sm:$0xff]
      %v254 = vld [vmem:[%s201 + $0x148] sm:$0xff]
      %v255 = vld [vmem:[%s201 + $0x150] sm:$0xff]
      %v256 = vld [vmem:[%s201 + $0x158] sm:$0xff]
      %v257 = vld [vmem:[%s201 + $0x160] sm:$0xff]
      %v258 = vld [vmem:[%s201 + $0x168] sm:$0xff]
      %v259 = vld [vmem:[%s201 + $0x170] sm:$0xff]
      %v260 = vld [vmem:[%s201 + $0x178] sm:$0xff]
      %v261 = vld [vmem:[%s201 + $0x180] sm:$0xff]
      %v262 = vld [vmem:[%s201 + $0x188] sm:$0xff]
      %v263 = vld [vmem:[%s201 + $0x190] sm:$0xff]
      %v264 = vld [vmem:[%s201 + $0x198] sm:$0xff]
      %v265 = vld [vmem:[%s201 + $0x1a0] sm:$0xff]
      %v266 = vld [vmem:[%s201 + $0x1a8] sm:$0xff]
      %v267 = vld [vmem:[%s201 + $0x1b0] sm:$0xff]
      %v268 = vld [vmem:[%s201 + $0x1b8] sm:$0xff]
      %v269 = vld [vmem:[%s201 + $0x1c0] sm:$0xff]
      %v270 = vld [vmem:[%s201 + $0x1c8] sm:$0xff]
      %v271 = vld [vmem:[%s201 + $0x1d0] sm:$0xff]
      %v272 = vld [vmem:[%s201 + $0x1d8] sm:$0xff]
      %v273 = vld [vmem:[%s201 + $0x1e0] sm:$0xff]
      %v274 = vld [vmem:[%s201 + $0x1e8] sm:$0xff]
      %v275 = vld [vmem:[%s201 + $0x1f0] sm:$0xff]
      %v276 = vld [vmem:[%s201 + $0x1f8] sm:$0xff]
      %v277 = vld [vmem:[%s1] sm:$0x1]
      %v279 = vlaneseq
      %v280 = vshrl.u32 %v279, 7
      %v281 = vsub.s32 0, %v280
      %v282 = vrot.slane %v277, %v281
      %v284 = vmul.f32 %v213, %v282
      %v285 = vmul.f32 %v214, %v282
      %v286 = vmul.f32 %v215, %v282
      %v287 = vmul.f32 %v216, %v282
      %v288 = vmul.f32 %v217, %v282
      %v289 = vmul.f32 %v218, %v282
      %v290 = vmul.f32 %v219, %v282
      %v291 = vmul.f32 %v220, %v282
      %v292 = vmul.f32 %v221, %v282
      %v293 = vmul.f32 %v222, %v282
      %v294 = vmul.f32 %v223, %v282
      %v295 = vmul.f32 %v224, %v282
      %v296 = vmul.f32 %v225, %v282
      %v297 = vmul.f32 %v226, %v282
      %v298 = vmul.f32 %v227, %v282
      %v299 = vmul.f32 %v228, %v282
      %v300 = vmul.f32 %v229, %v282
      %v301 = vmul.f32 %v230, %v282
      %v302 = vmul.f32 %v231, %v282
      %v303 = vmul.f32 %v232, %v282
      %v304 = vmul.f32 %v233, %v282
      %v305 = vmul.f32 %v234, %v282
      %v306 = vmul.f32 %v235, %v282
      %v307 = vmul.f32 %v236, %v282
      %v308 = vmul.f32 %v237, %v282
      %v309 = vmul.f32 %v238, %v282
      %v310 = vmul.f32 %v239, %v282
      %v311 = vmul.f32 %v240, %v282
      %v312 = vmul.f32 %v241, %v282
      %v313 = vmul.f32 %v242, %v282
      %v314 = vmul.f32 %v243, %v282
      %v315 = vmul.f32 %v244, %v282
      %v316 = vmul.f32 %v245, %v282
      %v317 = vmul.f32 %v246, %v282
      %v318 = vmul.f32 %v247, %v282
      %v319 = vmul.f32 %v248, %v282
      %v320 = vmul.f32 %v249, %v282
      %v321 = vmul.f32 %v250, %v282
      %v322 = vmul.f32 %v251, %v282
      %v323 = vmul.f32 %v252, %v282
      %v324 = vmul.f32 %v253, %v282
      %v325 = vmul.f32 %v254, %v282
      %v326 = vmul.f32 %v255, %v282
      %v327 = vmul.f32 %v256, %v282
      %v328 = vmul.f32 %v257, %v282
      %v329 = vmul.f32 %v258, %v282
      %v330 = vmul.f32 %v259, %v282
      %v331 = vmul.f32 %v260, %v282
      %v332 = vmul.f32 %v261, %v282
      %v333 = vmul.f32 %v262, %v282
      %v334 = vmul.f32 %v263, %v282
      %v335 = vmul.f32 %v264, %v282
      %v336 = vmul.f32 %v265, %v282
      %v337 = vmul.f32 %v266, %v282
      %v338 = vmul.f32 %v267, %v282
      %v339 = vmul.f32 %v268, %v282
      %v340 = vmul.f32 %v269, %v282
      %v341 = vmul.f32 %v270, %v282
      %v342 = vmul.f32 %v271, %v282
      %v343 = vmul.f32 %v272, %v282
      %v344 = vmul.f32 %v273, %v282
      %v345 = vmul.f32 %v274, %v282
      %v346 = vmul.f32 %v275, %v282
      %v347 = vmul.f32 %v276, %v282
      %v348 = vld [vmem:[%s2] sm:$0x1]
      %v350 = vlaneseq
      %v351 = vshrl.u32 %v350, 7
      %v352 = vsub.s32 0, %v351
      %v353 = vrot.slane %v348, %v352
      %v355 = vadd.f32 %v284, %v353
      %v356 = vadd.f32 %v285, %v353
      %v357 = vadd.f32 %v286, %v353
      %v358 = vadd.f32 %v287, %v353
      %v359 = vadd.f32 %v288, %v353
      %v360 = vadd.f32 %v289, %v353
      %v361 = vadd.f32 %v290, %v353
      %v362 = vadd.f32 %v291, %v353
      %v363 = vadd.f32 %v292, %v353
      %v364 = vadd.f32 %v293, %v353
      %v365 = vadd.f32 %v294, %v353
      %v366 = vadd.f32 %v295, %v353
      %v367 = vadd.f32 %v296, %v353
      %v368 = vadd.f32 %v297, %v353
      %v369 = vadd.f32 %v298, %v353
      %v370 = vadd.f32 %v299, %v353
      %v371 = vadd.f32 %v300, %v353
      %v372 = vadd.f32 %v301, %v353
      %v373 = vadd.f32 %v302, %v353
      %v374 = vadd.f32 %v303, %v353
      %v375 = vadd.f32 %v304, %v353
      %v376 = vadd.f32 %v305, %v353
      %v377 = vadd.f32 %v306, %v353
      %v378 = vadd.f32 %v307, %v353
      %v379 = vadd.f32 %v308, %v353
      %v380 = vadd.f32 %v309, %v353
      %v381 = vadd.f32 %v310, %v353
      %v382 = vadd.f32 %v311, %v353
      %v383 = vadd.f32 %v312, %v353
      %v384 = vadd.f32 %v313, %v353
      %v385 = vadd.f32 %v314, %v353
      %v386 = vadd.f32 %v315, %v353
      %v387 = vadd.f32 %v316, %v353
      %v388 = vadd.f32 %v317, %v353
      %v389 = vadd.f32 %v318, %v353
      %v390 = vadd.f32 %v319, %v353
      %v391 = vadd.f32 %v320, %v353
      %v392 = vadd.f32 %v321, %v353
      %v393 = vadd.f32 %v322, %v353
      %v394 = vadd.f32 %v323, %v353
      %v395 = vadd.f32 %v324, %v353
      %v396 = vadd.f32 %v325, %v353
      %v397 = vadd.f32 %v326, %v353
      %v398 = vadd.f32 %v327, %v353
      %v399 = vadd.f32 %v328, %v353
      %v400 = vadd.f32 %v329, %v353
      %v401 = vadd.f32 %v330, %v353
      %v402 = vadd.f32 %v331, %v353
      %v403 = vadd.f32 %v332, %v353
      %v404 = vadd.f32 %v333, %v353
      %v405 = vadd.f32 %v334, %v353
      %v406 = vadd.f32 %v335, %v353
      %v407 = vadd.f32 %v336, %v353
      %v408 = vadd.f32 %v337, %v353
      %v409 = vadd.f32 %v338, %v353
      %v410 = vadd.f32 %v339, %v353
      %v411 = vadd.f32 %v340, %v353
      %v412 = vadd.f32 %v341, %v353
      %v413 = vadd.f32 %v342, %v353
      %v414 = vadd.f32 %v343, %v353
      %v415 = vadd.f32 %v344, %v353
      %v416 = vadd.f32 %v345, %v353
      %v417 = vadd.f32 %v346, %v353
      %v418 = vadd.f32 %v347, %v353
      %419 = vxpose.xlu0.b32.start [1/16] %v355, 128
      %420 = vxpose.xlu0.b32.cont [2/16] %v356, 128
      %421 = vxpose.xlu0.b32.cont [3/16] %v357, 128
      %422 = vxpose.xlu0.b32.cont [4/16] %v358, 128
      %423 = vxpose.xlu0.b32.cont [5/16] %v359, 128
      %424 = vxpose.xlu0.b32.cont [6/16] %v360, 128
      %425 = vxpose.xlu0.b32.cont [7/16] %v361, 128
      %426 = vxpose.xlu0.b32.cont [8/16] %v362, 128
      %427 = vxpose.xlu0.b32.cont [9/16] %v363, 128
      %428 = vxpose.xlu0.b32.cont [10/16] %v364, 128
      %429 = vxpose.xlu0.b32.cont [11/16] %v365, 128
      %430 = vxpose.xlu0.b32.cont [12/16] %v366, 128
      %431 = vxpose.xlu0.b32.cont [13/16] %v367, 128
      %432 = vxpose.xlu0.b32.cont [14/16] %v368, 128
      %433 = vxpose.xlu0.b32.cont [15/16] %v369, 128
      %434 = vxpose.xlu0.b32.end [16/16] %v370, 128
      %v435 = vpop.trf.xlu0
      %v436 = vpop.trf.xlu0
      %v437 = vpop.trf.xlu0
      %v438 = vpop.trf.xlu0
      %v439 = vpop.trf.xlu0
      %v440 = vpop.trf.xlu0
      %v441 = vpop.trf.xlu0
      %v442 = vpop.trf.xlu0
      %v443 = vpop.trf.xlu0
      %v444 = vpop.trf.xlu0
      %v445 = vpop.trf.xlu0
      %v446 = vpop.trf.xlu0
      %v447 = vpop.trf.xlu0
      %v448 = vpop.trf.xlu0
      %v449 = vpop.trf.xlu0
      %v450 = vpop.trf.xlu0
      %451 = vxpose.xlu0.b32.start [1/16] %v371, 128
      %452 = vxpose.xlu0.b32.cont [2/16] %v372, 128
      %453 = vxpose.xlu0.b32.cont [3/16] %v373, 128
      %454 = vxpose.xlu0.b32.cont [4/16] %v374, 128
      %455 = vxpose.xlu0.b32.cont [5/16] %v375, 128
      %456 = vxpose.xlu0.b32.cont [6/16] %v376, 128
      %457 = vxpose.xlu0.b32.cont [7/16] %v377, 128
      %458 = vxpose.xlu0.b32.cont [8/16] %v378, 128
      %459 = vxpose.xlu0.b32.cont [9/16] %v379, 128
      %460 = vxpose.xlu0.b32.cont [10/16] %v380, 128
      %461 = vxpose.xlu0.b32.cont [11/16] %v381, 128
      %462 = vxpose.xlu0.b32.cont [12/16] %v382, 128
      %463 = vxpose.xlu0.b32.cont [13/16] %v383, 128
      %464 = vxpose.xlu0.b32.cont [14/16] %v384, 128
      %465 = vxpose.xlu0.b32.cont [15/16] %v385, 128
      %466 = vxpose.xlu0.b32.end [16/16] %v386, 128
      %v467 = vpop.trf.xlu0
      %v468 = vpop.trf.xlu0
      %v469 = vpop.trf.xlu0
      %v470 = vpop.trf.xlu0
      %v471 = vpop.trf.xlu0
      %v472 = vpop.trf.xlu0
      %v473 = vpop.trf.xlu0
      %v474 = vpop.trf.xlu0
      %v475 = vpop.trf.xlu0
      %v476 = vpop.trf.xlu0
      %v477 = vpop.trf.xlu0
      %v478 = vpop.trf.xlu0
      %v479 = vpop.trf.xlu0
      %v480 = vpop.trf.xlu0
      %v481 = vpop.trf.xlu0
      %v482 = vpop.trf.xlu0
      %483 = vxpose.xlu0.b32.start [1/16] %v387, 128
      %484 = vxpose.xlu0.b32.cont [2/16] %v388, 128
      %485 = vxpose.xlu0.b32.cont [3/16] %v389, 128
      %486 = vxpose.xlu0.b32.cont [4/16] %v390, 128
      %487 = vxpose.xlu0.b32.cont [5/16] %v391, 128
      %488 = vxpose.xlu0.b32.cont [6/16] %v392, 128
      %489 = vxpose.xlu0.b32.cont [7/16] %v393, 128
      %490 = vxpose.xlu0.b32.cont [8/16] %v394, 128
      %491 = vxpose.xlu0.b32.cont [9/16] %v395, 128
      %492 = vxpose.xlu0.b32.cont [10/16] %v396, 128
      %493 = vxpose.xlu0.b32.cont [11/16] %v397, 128
      %494 = vxpose.xlu0.b32.cont [12/16] %v398, 128
      %495 = vxpose.xlu0.b32.cont [13/16] %v399, 128
      %496 = vxpose.xlu0.b32.cont [14/16] %v400, 128
      %497 = vxpose.xlu0.b32.cont [15/16] %v401, 128
      %498 = vxpose.xlu0.b32.end [16/16] %v402, 128
      %v499 = vpop.trf.xlu0
      %v500 = vpop.trf.xlu0
      %v501 = vpop.trf.xlu0
      %v502 = vpop.trf.xlu0
      %v503 = vpop.trf.xlu0
      %v504 = vpop.trf.xlu0
      %v505 = vpop.trf.xlu0
      %v506 = vpop.trf.xlu0
      %v507 = vpop.trf.xlu0
      %v508 = vpop.trf.xlu0
      %v509 = vpop.trf.xlu0
      %v510 = vpop.trf.xlu0
      %v511 = vpop.trf.xlu0
      %v512 = vpop.trf.xlu0
      %v513 = vpop.trf.xlu0
      %v514 = vpop.trf.xlu0
      %515 = vxpose.xlu0.b32.start [1/16] %v403, 128
      %516 = vxpose.xlu0.b32.cont [2/16] %v404, 128
      %517 = vxpose.xlu0.b32.cont [3/16] %v405, 128
      %518 = vxpose.xlu0.b32.cont [4/16] %v406, 128
      %519 = vxpose.xlu0.b32.cont [5/16] %v407, 128
      %520 = vxpose.xlu0.b32.cont [6/16] %v408, 128
      %521 = vxpose.xlu0.b32.cont [7/16] %v409, 128
      %522 = vxpose.xlu0.b32.cont [8/16] %v410, 128
      %523 = vxpose.xlu0.b32.cont [9/16] %v411, 128
      %524 = vxpose.xlu0.b32.cont [10/16] %v412, 128
      %525 = vxpose.xlu0.b32.cont [11/16] %v413, 128
      %526 = vxpose.xlu0.b32.cont [12/16] %v414, 128
      %527 = vxpose.xlu0.b32.cont [13/16] %v415, 128
      %528 = vxpose.xlu0.b32.cont [14/16] %v416, 128
      %529 = vxpose.xlu0.b32.cont [15/16] %v417, 128
      %530 = vxpose.xlu0.b32.end [16/16] %v418, 128
      %v531 = vpop.trf.xlu0
      %v532 = vpop.trf.xlu0
      %v533 = vpop.trf.xlu0
      %v534 = vpop.trf.xlu0
      %v535 = vpop.trf.xlu0
      %v536 = vpop.trf.xlu0
      %v537 = vpop.trf.xlu0
      %v538 = vpop.trf.xlu0
      %v539 = vpop.trf.xlu0
      %v540 = vpop.trf.xlu0
      %v541 = vpop.trf.xlu0
      %v542 = vpop.trf.xlu0
      %v543 = vpop.trf.xlu0
      %v544 = vpop.trf.xlu0
      %v545 = vpop.trf.xlu0
      %v546 = vpop.trf.xlu0
      %547 = vst [vmem:[%s211] sm:$0xff] %v435
      %548 = vst [vmem:[%s211 + $0x8] sm:$0xff] %v467
      %549 = vst [vmem:[%s211 + $0x10] sm:$0xff] %v499
      %550 = vst [vmem:[%s211 + $0x18] sm:$0xff] %v531
      %551 = vst [vmem:[%s211 + $0x20] sm:$0xff] %v436
      %552 = vst [vmem:[%s211 + $0x28] sm:$0xff] %v468
      %553 = vst [vmem:[%s211 + $0x30] sm:$0xff] %v500
      %554 = vst [vmem:[%s211 + $0x38] sm:$0xff] %v532
      %555 = vst [vmem:[%s211 + $0x40] sm:$0xff] %v437
      %556 = vst [vmem:[%s211 + $0x48] sm:$0xff] %v469
      %557 = vst [vmem:[%s211 + $0x50] sm:$0xff] %v501
      %558 = vst [vmem:[%s211 + $0x58] sm:$0xff] %v533
      %559 = vst [vmem:[%s211 + $0x60] sm:$0xff] %v438
      %560 = vst [vmem:[%s211 + $0x68] sm:$0xff] %v470
      %561 = vst [vmem:[%s211 + $0x70] sm:$0xff] %v502
      %562 = vst [vmem:[%s211 + $0x78] sm:$0xff] %v534
      %563 = vst [vmem:[%s211 + $0x80] sm:$0xff] %v439
      %564 = vst [vmem:[%s211 + $0x88] sm:$0xff] %v471
      %565 = vst [vmem:[%s211 + $0x90] sm:$0xff] %v503
      %566 = vst [vmem:[%s211 + $0x98] sm:$0xff] %v535
      %567 = vst [vmem:[%s211 + $0xa0] sm:$0xff] %v440
      %568 = vst [vmem:[%s211 + $0xa8] sm:$0xff] %v472
      %569 = vst [vmem:[%s211 + $0xb0] sm:$0xff] %v504
      %570 = vst [vmem:[%s211 + $0xb8] sm:$0xff] %v536
      %571 = vst [vmem:[%s211 + $0xc0] sm:$0xff] %v441
      %572 = vst [vmem:[%s211 + $0xc8] sm:$0xff] %v473
      %573 = vst [vmem:[%s211 + $0xd0] sm:$0xff] %v505
      %574 = vst [vmem:[%s211 + $0xd8] sm:$0xff] %v537
      %575 = vst [vmem:[%s211 + $0xe0] sm:$0xff] %v442
      %576 = vst [vmem:[%s211 + $0xe8] sm:$0xff] %v474
      %577 = vst [vmem:[%s211 + $0xf0] sm:$0xff] %v506
      %578 = vst [vmem:[%s211 + $0xf8] sm:$0xff] %v538
      %579 = vst [vmem:[%s211 + $0x100] sm:$0xff] %v443
      %580 = vst [vmem:[%s211 + $0x108] sm:$0xff] %v475
      %581 = vst [vmem:[%s211 + $0x110] sm:$0xff] %v507
      %582 = vst [vmem:[%s211 + $0x118] sm:$0xff] %v539
      %583 = vst [vmem:[%s211 + $0x120] sm:$0xff] %v444
      %584 = vst [vmem:[%s211 + $0x128] sm:$0xff] %v476
      %585 = vst [vmem:[%s211 + $0x130] sm:$0xff] %v508
      %586 = vst [vmem:[%s211 + $0x138] sm:$0xff] %v540
      %587 = vst [vmem:[%s211 + $0x140] sm:$0xff] %v445
      %588 = vst [vmem:[%s211 + $0x148] sm:$0xff] %v477
      %589 = vst [vmem:[%s211 + $0x150] sm:$0xff] %v509
      %590 = vst [vmem:[%s211 + $0x158] sm:$0xff] %v541
      %591 = vst [vmem:[%s211 + $0x160] sm:$0xff] %v446
      %592 = vst [vmem:[%s211 + $0x168] sm:$0xff] %v478
      %593 = vst [vmem:[%s211 + $0x170] sm:$0xff] %v510
      %594 = vst [vmem:[%s211 + $0x178] sm:$0xff] %v542
      %595 = vst [vmem:[%s211 + $0x180] sm:$0xff] %v447
      %596 = vst [vmem:[%s211 + $0x188] sm:$0xff] %v479
      %597 = vst [vmem:[%s211 + $0x190] sm:$0xff] %v511
      %598 = vst [vmem:[%s211 + $0x198] sm:$0xff] %v543
      %599 = vst [vmem:[%s211 + $0x1a0] sm:$0xff] %v448
      %600 = vst [vmem:[%s211 + $0x1a8] sm:$0xff] %v480
      %601 = vst [vmem:[%s211 + $0x1b0] sm:$0xff] %v512
      %602 = vst [vmem:[%s211 + $0x1b8] sm:$0xff] %v544
      %603 = vst [vmem:[%s211 + $0x1c0] sm:$0xff] %v449
      %604 = vst [vmem:[%s211 + $0x1c8] sm:$0xff] %v481
      %605 = vst [vmem:[%s211 + $0x1d0] sm:$0xff] %v513
      %606 = vst [vmem:[%s211 + $0x1d8] sm:$0xff] %v545
      %607 = vst [vmem:[%s211 + $0x1e0] sm:$0xff] %v450
      %608 = vst [vmem:[%s211 + $0x1e8] sm:$0xff] %v482
      %609 = vst [vmem:[%s211 + $0x1f0] sm:$0xff] %v514
      %610 = vst [vmem:[%s211 + $0x1f8] sm:$0xff] %v546
      %s611 = smul.u32 4, %s19
      %p612 = scmp.lt.s32.totalorder %s18, 1
      %s613 = scalar_select %p612, %s18, 1
      %p614 = scmp.lt.s32.totalorder %s611, 3
      %s615 = scalar_select %p614, %s611, 3
      %s616 = smul.addr %s613, 64
      %s617 = sadd.s32 %s615, %s616
      %s618 = smul.addr %s617, 8
      %s619 = scalar_lea.vmem %s3, %s618
      // Predicated region
      $region33: #{residual_conv_forward.3} parent=31 // pred_check
        %p620 = pneg %p116
      $region34: #{residual_conv_forward.3} parent=31 // pred_check_branch
        %622 = sbr.rel (%p620) target = $region36
      $region35: #{residual_conv_forward.3} parent=31 // pred_region
        %s623 = smul.u32 4, %s19
      $region36: #{residual_conv_forward.3} parent=31 // pred_fallthru
        _
    $region32: #{residual_conv_forward.3} parent=5 // pred_fallthru
      _
    %p624 = scmp.le.s32.totalorder 2, %s9
    // Predicated region
    $region37: #{residual_conv_forward.3} parent=5 // pred_check
      %p625 = pneg %p624
    $region38: #{residual_conv_forward.3} parent=5 // pred_check_branch
      %627 = sbr.rel (%p625) target = $region40
    $region39: #{residual_conv_forward.3} parent=5 // pred_region
      %s628 = ssub.s32 %s9, 2
      // Predicated region
      $region41: #{residual_conv_forward.3} parent=39 // pred_check
        %p629 = pneg %p122
      $region42: #{residual_conv_forward.3} parent=39 // pred_check_branch
        %631 = sbr.rel (%p629) target = $region44
      $region43: #{residual_conv_forward.3} parent=39 // pred_region
        %s632 = smul.u32 4, %s21
        %p633 = scmp.lt.s32.totalorder %s20, 1
        %s634 = scalar_select %p633, %s20, 1
        %p635 = scmp.lt.s32.totalorder %s632, 3
        %s636 = scalar_select %p635, %s632, 3
        %s637 = smul.addr %s634, 64
        %s638 = sadd.s32 %s636, %s637
        %s639 = smul.addr %s638, 8
        %s640 = scalar_lea.vmem %s3, %s639
      $region44: #{residual_conv_forward.3} parent=39 // pred_fallthru
        _
    $region40: #{residual_conv_forward.3} parent=5 // pred_fallthru
      _
  $region6: #{residual_conv_forward.3} parent=0 // loop_footer
    %s13 = sadd.s32 1, %s9
  $region7: #{residual_conv_forward.3} parent=0 // loop_footer_branch
    %8 = sbr.rel target = $region3
  $region8: #{residual_conv_forward.3} parent=0 // loop_exit
    _

// kernel: residual_conv_forward.2
$region0: #{residual_conv_forward.2}
  #allocation0 [shape = 'u32[]', space=smem, size = 0x4, offset = 0x4, fixed_abs, tag = 'smem constant byte address 0x4 - core index']
  #allocation1 [shape = 'u32[144,128]{1,0:T(1,128)}', space=vmem, size = 0x12000, scoped, tag = 'internal scratch']
  %s0 = inlined_call_operand.vmem [shape: f32[4,18,16,192], index: 0, kind: input, shape index: {}]
  %s1 = inlined_call_operand.vmem [shape: f32[3,192,128], index: 1, kind: input, shape index: {}]
  %s2 = inlined_call_operand.vmem [shape: f32[1,128], index: 2, kind: input, shape index: {}]
  %s3 = inlined_call_operand.vmem [shape: f32[2,32,16,128], index: 3, kind: output, shape index: {0}]
  %s4 = inlined_call_operand.vmem [shape: f32[2,2,1,256], index: 4, kind: output, shape index: {1}]
  %5 = xla_tuple %s3, %s4
  %s6 = sld [smem:[#allocation0]]
  $region53: #{residual_conv_forward.2} parent=0
    _
  %s8 = ssub.s32 1, %s6
  %s9 = scalar_select 0, %s8, %s6
  loop: start=0, step=1, limit=6
  $region2: #{residual_conv_forward.2} parent=0 // loop_pre_header
    _
  $region3: #{residual_conv_forward.2} parent=0 // loop_header
    %s11 = sphi 0, %s15
    %p12 = scmp.ge.s32.totalorder %s11, 6
    %s18 = sphi 0, %s30
    %s19 = sphi 0, %s26
    %s20 = sphi 0, %s18
    %s21 = sphi 0, %s19
    %s22 = sphi 0, %s20
    %s23 = sphi 0, %s21
    %s37 = sphi 0, %s39
    %s40 = sphi 0, %s37
    %s41 = sphi 0, %s40
    %s57 = sphi 0, %s41
    %s61 = sphi 0, %s61
    %s63 = sphi 0, %s61
    %s64 = sphi 0, %s63
    %s78 = sphi 0, %s64
    %s82 = sphi 0, %s82
    %s84 = sphi 0, %s82
    %s85 = sphi 0, %s84
    %s99 = sphi 0, %s85
    %s107 = sphi 0, %s109
    %s110 = sphi 0, %s107
    %s111 = sphi 0, %s110
    %s127 = sphi 0, %s111
    %s135 = sphi 0, %s137
    %s138 = sphi 0, %s135
    %s139 = sphi 0, %s138
    %s155 = sphi 0, %s139
  $region4: #{residual_conv_forward.2} parent=0 // loop_header_branch
    %14 = sbr.rel (%p12) target = $region8
  $region5: #{residual_conv_forward.2} parent=0 // loop_body
    %s16 = ssub.s32 %s11, 1
    %s17 = ssub.s32 %s11, 2
    %s24 = sadd.s32 1, %s19
    %p25 = scmp.ge.s32.totalorder %s24, 2
    %s26 = scalar_select %p25, 0, %s24
    %s27 = sadd.s32 1, %s18
    %s28 = scalar_select %p25, %s27, %s18
    %p29 = scmp.ge.s32.totalorder %s28, 2
    %s30 = scalar_select %p29, 0, %s28
    %s31 = smul.u32 %s18, 2
    %s32 = sadd.s32 %s31, %s19
    %s33 = smul.u32 %s30, 2
    %s34 = sadd.s32 %s33, %s26
    %s35 = ssub.s32 %s32, %s34
    %p36 = scmp.eq.s32.totalorder %s35, 0
    %s38 = sadd.s32 %s37, 1
    %s39 = scalar_select %p36, %s37, %s38
    %p42 = pneg %p36
    %p43 = scmp.eq.s32.totalorder %s11, 3
    %p44 = por %p42, %p43
    %p45 = scmp.ne.s32.totalorder %s37, %s40
    %p46 = scmp.eq.s32.totalorder %s11, 0
    %p47 = por %p45, %p46
    %p48 = scmp.ne.s32.totalorder %s37, %s40
    %p49 = scmp.eq.s32.totalorder %s16, 3
    %p50 = por %p48, %p49
    %p51 = scmp.ne.s32.totalorder %s40, %s41
    %p52 = scmp.eq.s32.totalorder %s16, 0
    %p53 = por %p51, %p52
    %p54 = scmp.ne.s32.totalorder %s40, %s41
    %p55 = scmp.eq.s32.totalorder %s17, 3
    %p56 = por %p54, %p55
    %p58 = scmp.ne.s32.totalorder %s41, %s57
    %p59 = scmp.eq.s32.totalorder %s17, 0
    %p60 = por %p58, %p59
    %s62 = sadd.s32 %s61, 1
    %p65 = scmp.eq.s32.totalorder %s11, 3
    %p66 = scmp.ne.s32.totalorder %s61, %s63
    %p67 = scmp.eq.s32.totalorder %s11, 0
    %p68 = por %p66, %p67
    %p69 = scmp.ne.s32.totalorder %s61, %s63
    %p70 = scmp.eq.s32.totalorder %s16, 3
    %p71 = por %p69, %p70
    %p72 = scmp.ne.s32.totalorder %s63, %s64
    %p73 = scmp.eq.s32.totalorder %s16, 0
    %p74 = por %p72, %p73
    %p75 = scmp.ne.s32.totalorder %s63, %s64
    %p76 = scmp.eq.s32.totalorder %s17, 3
    %p77 = por %p75, %p76
    %p79 = scmp.ne.s32.totalorder %s64, %s78
    %p80 = scmp.eq.s32.totalorder %s17, 0
    %p81 = por %p79, %p80
    %s83 = sadd.s32 %s82, 1
    %p86 = scmp.eq.s32.totalorder %s11, 3
    %p87 = scmp.ne.s32.totalorder %s82, %s84
    %p88 = scmp.eq.s32.totalorder %s11, 0
    %p89 = por %p87, %p88
    %p90 = scmp.ne.s32.totalorder %s82, %s84
    %p91 = scmp.eq.s32.totalorder %s16, 3
    %p92 = por %p90, %p91
    %p93 = scmp.ne.s32.totalorder %s84, %s85
    %p94 = scmp.eq.s32.totalorder %s16, 0
    %p95 = por %p93, %p94
    %p96 = scmp.ne.s32.totalorder %s84, %s85
    %p97 = scmp.eq.s32.totalorder %s17, 3
    %p98 = por %p96, %p97
    %p100 = scmp.ne.s32.totalorder %s85, %s99
    %p101 = scmp.eq.s32.totalorder %s17, 0
    %p102 = por %p100, %p101
    %s103 = ssub.s32 %s18, %s30
    %s104 = ssub.s32 %s19, %s26
    %s105 = sor.u32 %s103, %s104
    %p106 = scmp.eq.s32.totalorder %s105, 0
    %s108 = sadd.s32 %s107, 1
    %s109 = scalar_select %p106, %s107, %s108
    %p112 = pneg %p106
    %p113 = scmp.eq.s32.totalorder %s11, 3
    %p114 = por %p112, %p113
    %p115 = scmp.ne.s32.totalorder %s107, %s110
    %p116 = scmp.eq.s32.totalorder %s11, 0
    %p117 = por %p115, %p116
    %p118 = scmp.ne.s32.totalorder %s107, %s110
    %p119 = scmp.eq.s32.totalorder %s16, 3
    %p120 = por %p118, %p119
    %p121 = scmp.ne.s32.totalorder %s110, %s111
    %p122 = scmp.eq.s32.totalorder %s16, 0
    %p123 = por %p121, %p122
    %p124 = scmp.ne.s32.totalorder %s110, %s111
    %p125 = scmp.eq.s32.totalorder %s17, 3
    %p126 = por %p124, %p125
    %p128 = scmp.ne.s32.totalorder %s111, %s127
    %p129 = scmp.eq.s32.totalorder %s17, 0
    %p130 = por %p128, %p129
    %s131 = ssub.s32 %s18, %s30
    %s132 = ssub.s32 %s19, %s26
    %s133 = sor.u32 %s131, %s132
    %p134 = scmp.eq.s32.totalorder %s133, 0
    %s136 = sadd.s32 %s135, 1
    %s137 = scalar_select %p134, %s135, %s136
    %p140 = pneg %p134
    %p141 = scmp.eq.s32.totalorder %s11, 3
    %p142 = por %p140, %p141
    %p143 = scmp.ne.s32.totalorder %s135, %s138
    %p144 = scmp.eq.s32.totalorder %s11, 0
    %p145 = por %p143, %p144
    %p146 = scmp.ne.s32.totalorder %s135, %s138
    %p147 = scmp.eq.s32.totalorder %s16, 3
    %p148 = por %p146, %p147
    %p149 = scmp.ne.s32.totalorder %s138, %s139
    %p150 = scmp.eq.s32.totalorder %s16, 0
    %p151 = por %p149, %p150
    %p152 = scmp.ne.s32.totalorder %s138, %s139
    %p153 = scmp.eq.s32.totalorder %s17, 3
    %p154 = por %p152, %p153
    %p156 = scmp.ne.s32.totalorder %s139, %s155
    %p157 = scmp.eq.s32.totalorder %s17, 0
    %p158 = por %p156, %p157
    %p159 = scmp.le.s32.totalorder 1, %s11
    %p160 = scmp.lt.s32.totalorder %s11, 5
    %p161 = pnand %p159, %p160
    %p162 = pneg %p161
    // Predicated region
    $region9: #{residual_conv_forward.2} parent=5 // pred_check
      _
    $region10: #{residual_conv_forward.2} parent=5 // pred_check_branch
      %164 = sbr.rel (%p161) target = $region12
    $region11: #{residual_conv_forward.2} parent=5 // pred_region
      %s165 = ssub.s32 %s11, 1
      // Predicated region
      $region13: #{residual_conv_forward.2} parent=11 // pred_check
        %p166 = pneg %p74
      $region14: #{residual_conv_forward.2} parent=11 // pred_check_branch
        %168 = sbr.rel (%p166) target = $region16
      $region15: #{residual_conv_forward.2} parent=11 // pred_region
        _
      $region16: #{residual_conv_forward.2} parent=11 // pred_fallthru
        _
      // Predicated region
      $region17: #{residual_conv_forward.2} parent=11 // pred_check
        %p169 = pneg %p95
      $region18: #{residual_conv_forward.2} parent=11 // pred_check_branch
        %171 = sbr.rel (%p169) target = $region20
      $region19: #{residual_conv_forward.2} parent=11 // pred_region
        _
      $region20: #{residual_conv_forward.2} parent=11 // pred_fallthru
        _
    $region12: #{residual_conv_forward.2} parent=5 // pred_fallthru
      _
    %p172 = scmp.lt.s32.totalorder %s11, 4
    // Predicated region
    $region21: #{residual_conv_forward.2} parent=5 // pred_check
      %p173 = pneg %p172
    $region22: #{residual_conv_forward.2} parent=5 // pred_check_branch
      %175 = sbr.rel (%p173) target = $region24
    $region23: #{residual_conv_forward.2} parent=5 // pred_region
      // Predicated region
      $region25: #{residual_conv_forward.2} parent=23 // pred_check
        %p176 = pneg %p47
      $region26: #{residual_conv_forward.2} parent=23 // pred_check_branch
        %178 = sbr.rel (%p176) target = $region28
      $region27: #{residual_conv_forward.2} parent=23 // pred_region
        %s179 = smul.u32 %s18, 2
        %s180 = sadd.s32 %s179, %s19
        %p181 = scmp.lt.s32.totalorder %s180, 3
        %s182 = scalar_select %p181, %s180, 3
        %s183 = smul.addr %s182, 72
        %s184 = smul.addr %s183, 8
        %s185 = scalar_lea.vmem %s0, %s184
        %s186 = smul.u32 %s18, 2
        %s187 = sadd.s32 %s186, %s19
      $region28: #{residual_conv_forward.2} parent=23 // pred_fallthru
        _
    $region24: #{residual_conv_forward.2} parent=5 // pred_fallthru
      _
    %p188 = scmp.le.s32.totalorder 1, %s11
    %p189 = scmp.lt.s32.totalorder %s11, 5
    %p190 = pnand %p188, %p189
    %p191 = pneg %p190
    // Predicated region
    $region29: #{residual_conv_forward.2} parent=5 // pred_check
      _
    $region30: #{residual_conv_forward.2} parent=5 // pred_check_branch
      %193 = sbr.rel (%p190) target = $region32
    $region31: #{residual_conv_forward.2} parent=5 // pred_region
      %s194 = ssub.s32 %s11, 1
      %s195 = smul.u32 %s20, 2
      %s196 = sadd.s32 %s195, %s21
      %p197 = scmp.lt.s32.totalorder %s196, 3
      %s198 = scalar_select %p197, %s196, 3
      %s199 = smul.addr %s198, 72
      %s200 = smul.addr %s199, 8
      %s201 = scalar_lea.vmem %s0, %s200
      %p202 = pneg %p53
      %p203 = pneg %p50
      %p204 = pneg %p74
      %p205 = pneg %p71
      %p206 = pneg %p95
      %p207 = pneg %p92
      %p208 = pneg %p123
      %p209 = pneg %p120
      %s210 = smul.u32 16, %s21
      %p211 = scmp.lt.s32.totalorder %s20, 1
      %s212 = scalar_select %p211, %s20, 1
      %p213 = scmp.lt.s32.totalorder %s210, 31
      %s214 = scalar_select %p213, %s210, 31
      %s215 = smul.addr %s214, 2
      %s216 = smul.addr %s212, 64
      %s217 = sadd.s32 %s215, %s216
      %s218 = smul.addr %s217, 8
      %s219 = scalar_lea.vmem %s3, %s218
      %p220 = pneg %p151
      %p221 = pneg %p148
      %p222 = scmp.lt.s32.totalorder %s20, 1
      %s223 = scalar_select %p222, %s20, 1
      %p224 = scmp.lt.s32.totalorder %s21, 1
      %s225 = scalar_select %p224, %s21, 1
      %s226 = smul.addr %s225, 2
      %s227 = smul.addr %s223, 4
      %s228 = sadd.s32 %s226, %s227
      %s229 = scalar_lea.vmem %s4, %s228
      %s230 = smul.u32 %s20, 2
      %s231 = sadd.s32 %s230, %s21
      %p232 = scmp.lt.s32.totalorder %s231, 3
      %s233 = scalar_select %p232, %s231, 3
      %s234 = smul.addr %s233, 72
      %s235 = smul.addr %s234, 8
      %s236 = scalar_lea.vmem %s0, %s235
      %s237 = smul.u32 %s20, 2
      %s238 = sadd.s32 %s237, %s21
      %s239 = smul.u32 16, %s21
      %p240 = scmp.lt.s32.totalorder %s20, 1
      %s241 = scalar_select %p240, %s20, 1
      %p242 = scmp.lt.s32.totalorder %s239, 31
      %s243 = scalar_select %p242, %s239, 31
      %s244 = smul.addr %s243, 2
      %s245 = smul.addr %s241, 64
      %s246 = sadd.s32 %s244, %s245
      %s247 = smul.addr %s246, 8
      %s248 = scalar_lea.vmem %s3, %s247
      %s249 = smul.u32 16, %s21
      %p250 = scmp.lt.s32.totalorder %s20, 1
      %s251 = scalar_select %p250, %s20, 1
      %p252 = scmp.lt.s32.totalorder %s21, 1
      %s253 = scalar_select %p252, %s21, 1
      %s254 = smul.addr %s253, 2
      %s255 = smul.addr %s251, 4
      %s256 = sadd.s32 %s254, %s255
      %s257 = scalar_lea.vmem %s4, %s256
      %v258 = vld [vmem:[%s236] sm:$0xff]
      %v259 = vld [vmem:[%s236 + $0x8] sm:$0xff]
      %v260 = vld [vmem:[%s236 + $0x10] sm:$0xff]
      %v261 = vld [vmem:[%s236 + $0x18] sm:$0xff]
      %v262 = vld [vmem:[%s236 + $0x20] sm:$0xff]
      %v263 = vld [vmem:[%s236 + $0x28] sm:$0xff]
      %v264 = vld [vmem:[%s236 + $0x30] sm:$0xff]
      %v265 = vld [vmem:[%s236 + $0x38] sm:$0xff]
      %v266 = vld [vmem:[%s236 + $0x40] sm:$0xff]
      %v267 = vld [vmem:[%s236 + $0x48] sm:$0xff]
      %v268 = vld [vmem:[%s236 + $0x50] sm:$0xff]
      %v269 = vld [vmem:[%s236 + $0x58] sm:$0xff]
      %v270 = vld [vmem:[%s236 + $0x60] sm:$0xff]
      %v271 = vld [vmem:[%s236 + $0x68] sm:$0xff]
      %v272 = vld [vmem:[%s236 + $0x70] sm:$0xff]
      %v273 = vld [vmem:[%s236 + $0x78] sm:$0xff]
      %v274 = vld [vmem:[%s236 + $0x80] sm:$0xff]
      %v275 = vld [vmem:[%s236 + $0x88] sm:$0xff]
      %v276 = vld [vmem:[%s236 + $0x90] sm:$0xff]
      %v277 = vld [vmem:[%s236 + $0x98] sm:$0xff]
      %v278 = vld [vmem:[%s236 + $0xa0] sm:$0xff]
      %v279 = vld [vmem:[%s236 + $0xa8] sm:$0xff]
      %v280 = vld [vmem:[%s236 + $0xb0] sm:$0xff]
      %v281 = vld [vmem:[%s236 + $0xb8] sm:$0xff]
      %v282 = vld [vmem:[%s236 + $0xc0] sm:$0xff]
      %v283 = vld [vmem:[%s236 + $0xc8] sm:$0xff]
      %v284 = vld [vmem:[%s236 + $0xd0] sm:$0xff]
      %v285 = vld [vmem:[%s236 + $0xd8] sm:$0xff]
      %v286 = vld [vmem:[%s236 + $0xe0] sm:$0xff]
      %v287 = vld [vmem:[%s236 + $0xe8] sm:$0xff]
      %v288 = vld [vmem:[%s236 + $0xf0] sm:$0xff]
      %v289 = vld [vmem:[%s236 + $0xf8] sm:$0xff]
      %v290 = vld [vmem:[%s236 + $0x100] sm:$0xff]
      %v291 = vld [vmem:[%s236 + $0x108] sm:$0xff]
      %v292 = vld [vmem:[%s236 + $0x110] sm:$0xff]
      %v293 = vld [vmem:[%s236 + $0x118] sm:$0xff]
      %v294 = vld [vmem:[%s236 + $0x120] sm:$0xff]
      %v295 = vld [vmem:[%s236 + $0x128] sm:$0xff]
      %v296 = vld [vmem:[%s236 + $0x130] sm:$0xff]
      %v297 = vld [vmem:[%s236 + $0x138] sm:$0xff]
      %v298 = vld [vmem:[%s236 + $0x140] sm:$0xff]
      %v299 = vld [vmem:[%s236 + $0x148] sm:$0xff]
      %v300 = vld [vmem:[%s236 + $0x150] sm:$0xff]
      %v301 = vld [vmem:[%s236 + $0x158] sm:$0xff]
      %v302 = vld [vmem:[%s236 + $0x160] sm:$0xff]
      %v303 = vld [vmem:[%s236 + $0x168] sm:$0xff]
      %v304 = vld [vmem:[%s236 + $0x170] sm:$0xff]
      %v305 = vld [vmem:[%s236 + $0x178] sm:$0xff]
      %v306 = vld [vmem:[%s236 + $0x180] sm:$0xff]
      %v307 = vld [vmem:[%s236 + $0x188] sm:$0xff]
      %v308 = vld [vmem:[%s236 + $0x190] sm:$0xff]
      %v309 = vld [vmem:[%s236 + $0x198] sm:$0xff]
      %v310 = vld [vmem:[%s236 + $0x1a0] sm:$0xff]
      %v311 = vld [vmem:[%s236 + $0x1a8] sm:$0xff]
      %v312 = vld [vmem:[%s236 + $0x1b0] sm:$0xff]
      %v313 = vld [vmem:[%s236 + $0x1b8] sm:$0xff]
      %v314 = vld [vmem:[%s236 + $0x1c0] sm:$0xff]
      %v315 = vld [vmem:[%s236 + $0x1c8] sm:$0xff]
      %v316 = vld [vmem:[%s236 + $0x1d0] sm:$0xff]
      %v317 = vld [vmem:[%s236 + $0x1d8] sm:$0xff]
      %v318 = vld [vmem:[%s236 + $0x1e0] sm:$0xff]
      %v319 = vld [vmem:[%s236 + $0x1e8] sm:$0xff]
      %v320 = vld [vmem:[%s236 + $0x1f0] sm:$0xff]
      %v321 = vld [vmem:[%s236 + $0x1f8] sm:$0xff]
      %v322 = vld [vmem:[%s1] sm:$0xff]
      %v323 = vld [vmem:[%s1 + $0x8] sm:$0xff]
      %v324 = vld [vmem:[%s1 + $0x10] sm:$0xff]
      %v325 = vld [vmem:[%s1 + $0x18] sm:$0xff]
      %v326 = vld [vmem:[%s1 + $0x20] sm:$0xff]
      %v327 = vld [vmem:[%s1 + $0x28] sm:$0xff]
      %v328 = vld [vmem:[%s1 + $0x30] sm:$0xff]
      %v329 = vld [vmem:[%s1 + $0x38] sm:$0xff]
      %v330 = vld [vmem:[%s1 + $0x40] sm:$0xff]
      %v331 = vld [vmem:[%s1 + $0x48] sm:$0xff]
      %v332 = vld [vmem:[%s1 + $0x50] sm:$0xff]
      %v333 = vld [vmem:[%s1 + $0x58] sm:$0xff]
      %v334 = vld [vmem:[%s1 + $0x60] sm:$0xff]
      %v335 = vld [vmem:[%s1 + $0x68] sm:$0xff]
      %v336 = vld [vmem:[%s1 + $0x70] sm:$0xff]
      %v337 = vld [vmem:[%s1 + $0x78] sm:$0xff]
      %v338 = vld [vmem:[%s1 + $0x80] sm:$0xff]
      %v339 = vld [vmem:[%s1 + $0x88] sm:$0xff]
      %v340 = vld [vmem:[%s1 + $0x90] sm:$0xff]
      %v341 = vld [vmem:[%s1 + $0x98] sm:$0xff]
      %v342 = vld [vmem:[%s1 + $0xa0] sm:$0xff]
      %v343 = vld [vmem:[%s1 + $0xa8] sm:$0xff]
      %v344 = vld [vmem:[%s1 + $0xb0] sm:$0xff]
      %v345 = vld [vmem:[%s1 + $0xb8] sm:$0xff]
      %s346 = scalar_lea.vmem %s236, 32
      %v347 = vld [vmem:[%s346] sm:$0xff]
      %v348 = vld [vmem:[%s346 + $0x8] sm:$0xff]
      %v349 = vld [vmem:[%s346 + $0x10] sm:$0xff]
      %v350 = vld [vmem:[%s346 + $0x18] sm:$0xff]
      %v351 = vld [vmem:[%s346 + $0x20] sm:$0xff]
      %v352 = vld [vmem:[%s346 + $0x28] sm:$0xff]
      %v353 = vld [vmem:[%s346 + $0x30] sm:$0xff]
      %v354 = vld [vmem:[%s346 + $0x38] sm:$0xff]
      %v355 = vld [vmem:[%s346 + $0x40] sm:$0xff]
      %v356 = vld [vmem:[%s346 + $0x48] sm:$0xff]
      %v357 = vld [vmem:[%s346 + $0x50] sm:$0xff]
      %v358 = vld [vmem:[%s346 + $0x58] sm:$0xff]
      %v359 = vld [vmem:[%s346 + $0x60] sm:$0xff]
      %v360 = vld [vmem:[%s346 + $0x68] sm:$0xff]
      %v361 = vld [vmem:[%s346 + $0x70] sm:$0xff]
      %v362 = vld [vmem:[%s346 + $0x78] sm:$0xff]
      %v363 = vld [vmem:[%s346 + $0x80] sm:$0xff]
      %v364 = vld [vmem:[%s346 + $0x88] sm:$0xff]
      %v365 = vld [vmem:[%s346 + $0x90] sm:$0xff]
      %v366 = vld [vmem:[%s346 + $0x98] sm:$0xff]
      %v367 = vld [vmem:[%s346 + $0xa0] sm:$0xff]
      %v368 = vld [vmem:[%s346 + $0xa8] sm:$0xff]
      %v369 = vld [vmem:[%s346 + $0xb0] sm:$0xff]
      %v370 = vld [vmem:[%s346 + $0xb8] sm:$0xff]
      %v371 = vld [vmem:[%s346 + $0xc0] sm:$0xff]
      %v372 = vld [vmem:[%s346 + $0xc8] sm:$0xff]
      %v373 = vld [vmem:[%s346 + $0xd0] sm:$0xff]
      %v374 = vld [vmem:[%s346 + $0xd8] sm:$0xff]
      %v375 = vld [vmem:[%s346 + $0xe0] sm:$0xff]
      %v376 = vld [vmem:[%s346 + $0xe8] sm:$0xff]
      %v377 = vld [vmem:[%s346 + $0xf0] sm:$0xff]
      %v378 = vld [vmem:[%s346 + $0xf8] sm:$0xff]
      %v379 = vld [vmem:[%s346 + $0x100] sm:$0xff]
      %v380 = vld [vmem:[%s346 + $0x108] sm:$0xff]
      %v381 = vld [vmem:[%s346 + $0x110] sm:$0xff]
      %v382 = vld [vmem:[%s346 + $0x118] sm:$0xff]
      %v383 = vld [vmem:[%s346 + $0x120] sm:$0xff]
      %v384 = vld [vmem:[%s346 + $0x128] sm:$0xff]
      %v385 = vld [vmem:[%s346 + $0x130] sm:$0xff]
      %v386 = vld [vmem:[%s346 + $0x138] sm:$0xff]
      %v387 = vld [vmem:[%s346 + $0x140] sm:$0xff]
      %v388 = vld [vmem:[%s346 + $0x148] sm:$0xff]
      %v389 = vld [vmem:[%s346 + $0x150] sm:$0xff]
      %v390 = vld [vmem:[%s346 + $0x158] sm:$0xff]
      %v391 = vld [vmem:[%s346 + $0x160] sm:$0xff]
      %v392 = vld [vmem:[%s346 + $0x168] sm:$0xff]
      %v393 = vld [vmem:[%s346 + $0x170] sm:$0xff]
      %v394 = vld [vmem:[%s346 + $0x178] sm:$0xff]
      %v395 = vld [vmem:[%s346 + $0x180] sm:$0xff]
      %v396 = vld [vmem:[%s346 + $0x188] sm:$0xff]
      %v397 = vld [vmem:[%s346 + $0x190] sm:$0xff]
      %v398 = vld [vmem:[%s346 + $0x198] sm:$0xff]
      %v399 = vld [vmem:[%s346 + $0x1a0] sm:$0xff]
      %v400 = vld [vmem:[%s346 + $0x1a8] sm:$0xff]
      %v401 = vld [vmem:[%s346 + $0x1b0] sm:$0xff]
      %v402 = vld [vmem:[%s346 + $0x1b8] sm:$0xff]
      %v403 = vld [vmem:[%s346 + $0x1c0] sm:$0xff]
      %v404 = vld [vmem:[%s346 + $0x1c8] sm:$0xff]
      %v405 = vld [vmem:[%s346 + $0x1d0] sm:$0xff]
      %v406 = vld [vmem:[%s346 + $0x1d8] sm:$0xff]
      %v407 = vld [vmem:[%s346 + $0x1e0] sm:$0xff]
      %v408 = vld [vmem:[%s346 + $0x1e8] sm:$0xff]
      %v409 = vld [vmem:[%s346 + $0x1f0] sm:$0xff]
      %v410 = vld [vmem:[%s346 + $0x1f8] sm:$0xff]
      %s411 = scalar_lea.vmem %s1, 192
      %v412 = vld [vmem:[%s411] sm:$0xff]
      %v413 = vld [vmem:[%s411 + $0x8] sm:$0xff]
      %v414 = vld [vmem:[%s411 + $0x10] sm:$0xff]
      %v415 = vld [vmem:[%s411 + $0x18] sm:$0xff]
      %v416 = vld [vmem:[%s411 + $0x20] sm:$0xff]
      %v417 = vld [vmem:[%s411 + $0x28] sm:$0xff]
      %v418 = vld [vmem:[%s411 + $0x30] sm:$0xff]
      %v419 = vld [vmem:[%s411 + $0x38] sm:$0xff]
      %v420 = vld [vmem:[%s411 + $0x40] sm:$0xff]
      %v421 = vld [vmem:[%s411 + $0x48] sm:$0xff]
      %v422 = vld [vmem:[%s411 + $0x50] sm:$0xff]
      %v423 = vld [vmem:[%s411 + $0x58] sm:$0xff]
      %v424 = vld [vmem:[%s411 + $0x60] sm:$0xff]
      %v425 = vld [vmem:[%s411 + $0x68] sm:$0xff]
      %v426 = vld [vmem:[%s411 + $0x70] sm:$0xff]
      %v427 = vld [vmem:[%s411 + $0x78] sm:$0xff]
      %v428 = vld [vmem:[%s411 + $0x80] sm:$0xff]
      %v429 = vld [vmem:[%s411 + $0x88] sm:$0xff]
      %v430 = vld [vmem:[%s411 + $0x90] sm:$0xff]
      %v431 = vld [vmem:[%s411 + $0x98] sm:$0xff]
      %v432 = vld [vmem:[%s411 + $0xa0] sm:$0xff]
      %v433 = vld [vmem:[%s411 + $0xa8] sm:$0xff]
      %v434 = vld [vmem:[%s411 + $0xb0] sm:$0xff]
      %v435 = vld [vmem:[%s411 + $0xb8] sm:$0xff]
      %vm436 = vcmask 523264
      %v438 = vsel %vm436, %v348, 0
      %v441 = vsel %vm436, %v350, 0
      %v444 = vsel %vm436, %v352, 0
      %v447 = vsel %vm436, %v354, 0
      %v450 = vsel %vm436, %v356, 0
      %v453 = vsel %vm436, %v358, 0
      %v456 = vsel %vm436, %v360, 0
      %v459 = vsel %vm436, %v362, 0
      %v462 = vsel %vm436, %v364, 0
      %v465 = vsel %vm436, %v366, 0
      %v468 = vsel %vm436, %v368, 0
      %v471 = vsel %vm436, %v370, 0
      %v474 = vsel %vm436, %v372, 0
      %v477 = vsel %vm436, %v374, 0
      %v480 = vsel %vm436, %v376, 0
      %v483 = vsel %vm436, %v378, 0
      %v486 = vsel %vm436, %v380, 0
      %v489 = vsel %vm436, %v382, 0
      %v492 = vsel %vm436, %v384, 0
      %v495 = vsel %vm436, %v386, 0
      %v498 = vsel %vm436, %v388, 0
      %v501 = vsel %vm436, %v390, 0
      %v504 = vsel %vm436, %v392, 0
      %v507 = vsel %vm436, %v394, 0
      %v510 = vsel %vm436, %v396, 0
      %v513 = vsel %vm436, %v398, 0
      %v516 = vsel %vm436, %v400, 0
      %v519 = vsel %vm436, %v402, 0
      %v522 = vsel %vm436, %v404, 0
      %v525 = vsel %vm436, %v406, 0
      %v528 = vsel %vm436, %v408, 0
      %v531 = vsel %vm436, %v410, 0
      %533 = vmatprep.subr.mxu0 0.0
      %534 = vmatpush1.msra.mxu0 %v427
      %535 = vmatprep.subr.mxu0 0.0
      %536 = vmatpush1.msra.mxu0 %v426
      %537 = vmatprep.subr.mxu0 0.0
      %538 = vmatpush1.msra.mxu0 %v425
      %539 = vmatprep.subr.mxu0 0.0
      %540 = vmatpush1.msra.mxu0 %v424
      %541 = vmatprep.subr.mxu0 0.0
      %542 = vmatpush1.msra.mxu0 %v423
      %543 = vmatprep.subr.mxu0 0.0
      %544 = vmatpush1.msra.mxu0 %v422
      %545 = vmatprep.subr.mxu0 0.0
      %546 = vmatpush1.msra.mxu0 %v421
      %547 = vmatprep.subr.mxu0 0.0
      %548 = vmatpush1.msra.mxu0 %v420
      %549 = vmatprep.subr.mxu0 0.0
      %550 = vmatpush1.msra.mxu0 %v419
      %551 = vmatprep.subr.mxu0 0.0
      %552 = vmatpush1.msra.mxu0 %v418
      %553 = vmatprep.subr.mxu0 0.0
      %554 = vmatpush1.msra.mxu0 %v417
      %555 = vmatprep.subr.mxu0 0.0
      %556 = vmatpush1.msra.mxu0 %v416
      %557 = vmatprep.subr.mxu0 0.0
      %558 = vmatpush1.msra.mxu0 %v415
      %559 = vmatprep.subr.mxu0 0.0
      %560 = vmatpush1.msra.mxu0 %v414
      %561 = vmatprep.subr.mxu0 0.0
      %562 = vmatpush1.msra.mxu0 %v413
      %563 = vmatprep.subr.mxu0 0.0
      %564 = vmatpush1.msra.mxu0 %v412
      %565 = vmatprep.subr.mxu0 0.0
      %566 = vmatpush2.msra.mxu0 0.0
      %567 = vmatprep.subr.mxu0 0.0
      %568 = vmatpush2.msra.mxu0 0.0
      %569 = vmatprep.subr.mxu0 0.0
      %570 = vmatpush2.msra.mxu0 0.0
      %571 = vmatprep.subr.mxu0 0.0
      %572 = vmatpush2.msra.mxu0 0.0
      %573 = vmatprep.subr.mxu0 0.0
      %574 = vmatpush2.msra.mxu0 0.0
      %575 = vmatprep.subr.mxu0 0.0
      %576 = vmatpush2.msra.mxu0 0.0
      %577 = vmatprep.subr.mxu0 0.0
      %578 = vmatpush2.msra.mxu0 0.0
      %579 = vmatprep.subr.mxu0 0.0
      %580 = vmatpush2.msra.mxu0 0.0
      %581 = vmatprep.subr.mxu0 0.0
      %582 = vmatpush2.msra.mxu0 %v435
      %583 = vmatprep.subr.mxu0 0.0
      %584 = vmatpush2.msra.mxu0 %v434
      %585 = vmatprep.subr.mxu0 0.0
      %586 = vmatpush2.msra.mxu0 %v433
      %587 = vmatprep.subr.mxu0 0.0
      %588 = vmatpush2.msra.mxu0 %v432
      %589 = vmatprep.subr.mxu0 0.0
      %590 = vmatpush2.msra.mxu0 %v431
      %591 = vmatprep.subr.mxu0 0.0
      %592 = vmatpush2.msra.mxu0 %v430
      %593 = vmatprep.subr.mxu0 0.0
      %594 = vmatpush2.msra.mxu0 %v429
      %595 = vmatprep.subr.mxu0 0.0
      %596 = vmatpush2.msra.mxu0 %v428
      %597 = vmatprep.mubr.f32.mxu0 %v438
      %598 = vmatmul.mubr.f32.gmra.mxu0 %v347
      %v599 = vpop.f32.mrf.mxu0
      %v600 = vadd.f32 0.0, %v599
      %v601 = vpop.f32.mrf.mxu0
      %602 = vmatprep.mubr.f32.mxu0 %v441
      %603 = vmatmul.mubr.f32.gmra.mxu0 %v349
      %v604 = vpop.f32.mrf.mxu0
      %v605 = vadd.f32 0.0, %v604
      %v606 = vpop.f32.mrf.mxu0
      %607 = vmatprep.mubr.f32.mxu0 %v444
      %608 = vmatmul.mubr.f32.gmra.mxu0 %v351
      %v609 = vpop.f32.mrf.mxu0
      %v610 = vadd.f32 0.0, %v609
      %v611 = vpop.f32.mrf.mxu0
      %612 = vmatprep.mubr.f32.mxu0 %v447
      %613 = vmatmul.mubr.f32.gmra.mxu0 %v353
      %v614 = vpop.f32.mrf.mxu0
      %v615 = vadd.f32 0.0, %v614
      %v616 = vpop.f32.mrf.mxu0
      %617 = vmatprep.mubr.f32.mxu0 %v450
      %618 = vmatmul.mubr.f32.gmra.mxu0 %v355
      %v619 = vpop.f32.mrf.mxu0
      %v620 = vadd.f32 0.0, %v619
      %v621 = vpop.f32.mrf.mxu0
      %622 = vmatprep.mubr.f32.mxu0 %v453
      %623 = vmatmul.mubr.f32.gmra.mxu0 %v357
      %v624 = vpop.f32.mrf.mxu0
      %v625 = vadd.f32 0.0, %v624
      %v626 = vpop.f32.mrf.mxu0
      %627 = vmatprep.mubr.f32.mxu0 %v456
      %628 = vmatmul.mubr.f32.gmra.mxu0 %v359
      %v629 = vpop.f32.mrf.mxu0
      %v630 = vadd.f32 0.0, %v629
      %v631 = vpop.f32.mrf.mxu0
      %632 = vmatprep.mubr.f32.mxu0 %v459
      %633 = vmatmul.mubr.f32.gmra.mxu0 %v361
      %v634 = vpop.f32.mrf.mxu0
      %v635 = vadd.f32 0.0, %v634
      %v636 = vpop.f32.mrf.mxu0
      %637 = vmatprep.mubr.f32.mxu0 %v462
      %638 = vmatmul.mubr.f32.gmra.mxu0 %v363
      %v639 = vpop.f32.mrf.mxu0
      %v640 = vadd.f32 0.0, %v639
      %v641 = vpop.f32.mrf.mxu0
      %642 = vmatprep.mubr.f32.mxu0 %v465
      %643 = vmatmul.mubr.f32.gmra.mxu0 %v365
      %v644 = vpop.f32.mrf.mxu0
      %v645 = vadd.f32 0.0, %v644
      %v646 = vpop.f32.mrf.mxu0
      %647 = vmatprep.mubr.f32.mxu0 %v468
      %648 = vmatmul.mubr.f32.gmra.mxu0 %v367
      %v649 = vpop.f32.mrf.mxu0
      %v650 = vadd.f32 0.0, %v649
      %v651 = vpop.f32.mrf.mxu0
      %652 = vmatprep.mubr.f32.mxu0 %v471
      %653 = vmatmul.mubr.f32.gmra.mxu0 %v369
      %v654 = vpop.f32.mrf.mxu0
      %v655 = vadd.f32 0.0, %v654
      %v656 = vpop.f32.mrf.mxu0
      %657 = vmatprep.mubr.f32.mxu0 %v474
      %658 = vmatmul.mubr.f32.gmra.mxu0 %v371
      %v659 = vpop.f32.mrf.mxu0
      %v660 = vadd.f32 0.0, %v659
      %v661 = vpop.f32.mrf.mxu0
      %662 = vmatprep.mubr.f32.mxu0 %v477
      %663 = vmatmul.mubr.f32.gmra.mxu0 %v373
      %v664 = vpop.f32.mrf.mxu0
      %v665 = vadd.f32 0.0, %v664
      %v666 = vpop.f32.mrf.mxu0
      %667 = vmatprep.mubr.f32.mxu0 %v480
      %668 = vmatmul.mubr.f32.gmra.mxu0 %v375
      %v669 = vpop.f32.mrf.mxu0
      %v670 = vadd.f32 0.0, %v669
      %v671 = vpop.f32.mrf.mxu0
      %672 = vmatprep.mubr.f32.mxu0 %v483
      %673 = vmatmul.mubr.f32.gmra.mxu0 %v377
      %v674 = vpop.f32.mrf.mxu0
      %v675 = vadd.f32 0.0, %v674
      %v676 = vpop.f32.mrf.mxu0
      %677 = vmatprep.mubr.f32.mxu0 %v486
      %678 = vmatmul.mubr.f32.gmra.mxu0 %v379
      %v679 = vpop.f32.mrf.mxu0
      %v680 = vadd.f32 0.0, %v679
      %v681 = vpop.f32.mrf.mxu0
      %682 = vmatprep.mubr.f32.mxu0 %v489
      %683 = vmatmul.mubr.f32.gmra.mxu0 %v381
      %v684 = vpop.f32.mrf.mxu0
      %v685 = vadd.f32 0.0, %v684
      %v686 = vpop.f32.mrf.mxu0
      %687 = vmatprep.mubr.f32.mxu0 %v492
      %688 = vmatmul.mubr.f32.gmra.mxu0 %v383
      %v689 = vpop.f32.mrf.mxu0
      %v690 = vadd.f32 0.0, %v689
      %v691 = vpop.f32.mrf.mxu0
      %692 = vmatprep.mubr.f32.mxu0 %v495
      %693 = vmatmul.mubr.f32.gmra.mxu0 %v385
      %v694 = vpop.f32.mrf.mxu0
      %v695 = vadd.f32 0.0, %v694
      %v696 = vpop.f32.mrf.mxu0
      %697 = vmatprep.mubr.f32.mxu0 %v498
      %698 = vmatmul.mubr.f32.gmra.mxu0 %v387
      %v699 = vpop.f32.mrf.mxu0
      %v700 = vadd.f32 0.0, %v699
      %v701 = vpop.f32.mrf.mxu0
      %702 = vmatprep.mubr.f32.mxu0 %v501
      %703 = vmatmul.mubr.f32.gmra.mxu0 %v389
      %v704 = vpop.f32.mrf.mxu0
      %v705 = vadd.f32 0.0, %v704
      %v706 = vpop.f32.mrf.mxu0
      %707 = vmatprep.mubr.f32.mxu0 %v504
      %708 = vmatmul.mubr.f32.gmra.mxu0 %v391
      %v709 = vpop.f32.mrf.mxu0
      %v710 = vadd.f32 0.0, %v709
      %v711 = vpop.f32.mrf.mxu0
      %712 = vmatprep.mubr.f32.mxu0 %v507
      %713 = vmatmul.mubr.f32.gmra.mxu0 %v393
      %v714 = vpop.f32.mrf.mxu0
      %v715 = vadd.f32 0.0, %v714
      %v716 = vpop.f32.mrf.mxu0
      %717 = vmatprep.mubr.f32.mxu0 %v510
      %718 = vmatmul.mubr.f32.gmra.mxu0 %v395
      %v719 = vpop.f32.mrf.mxu0
      %v720 = vadd.f32 0.0, %v719
      %v721 = vpop.f32.mrf.mxu0
      %722 = vmatprep.mubr.f32.mxu0 %v513
      %723 = vmatmul.mubr.f32.gmra.mxu0 %v397
      %v724 = vpop.f32.mrf.mxu0
      %v725 = vadd.f32 0.0, %v724
      %v726 = vpop.f32.mrf.mxu0
      %727 = vmatprep.mubr.f32.mxu0 %v516
      %728 = vmatmul.mubr.f32.gmra.mxu0 %v399
      %v729 = vpop.f32.mrf.mxu0
      %v730 = vadd.f32 0.0, %v729
      %v731 = vpop.f32.mrf.mxu0
      %732 = vmatprep.mubr.f32.mxu0 %v519
      %733 = vmatmul.mubr.f32.gmra.mxu0 %v401
      %v734 = vpop.f32.mrf.mxu0
      %v735 = vadd.f32 0.0, %v734
      %v736 = vpop.f32.mrf.mxu0
      %737 = vmatprep.mubr.f32.mxu0 %v522
      %738 = vmatmul.mubr.f32.gmra.mxu0 %v403
      %v739 = vpop.f32.mrf.mxu0
      %v740 = vadd.f32 0.0, %v739
      %v741 = vpop.f32.mrf.mxu0
      %742 = vmatprep.mubr.f32.mxu0 %v525
      %743 = vmatmul.mubr.f32.gmra.mxu0 %v405
      %v744 = vpop.f32.mrf.mxu0
      %v745 = vadd.f32 0.0, %v744
      %v746 = vpop.f32.mrf.mxu0
      %747 = vmatprep.mubr.f32.mxu0 %v528
      %748 = vmatmul.mubr.f32.gmra.mxu0 %v407
      %v749 = vpop.f32.mrf.mxu0
      %v750 = vadd.f32 0.0, %v749
      %v751 = vpop.f32.mrf.mxu0
      %752 = vmatprep.mubr.f32.mxu0 %v531
      %753 = vmatmul.mubr.f32.gmra.mxu0 %v409
      %v754 = vpop.f32.mrf.mxu0
      %v755 = vadd.f32 0.0, %v754
      %v756 = vpop.f32.mrf.mxu0
      %757 = vdwg.mxu0
      %v759 = vsel %vm436, %v259, 0
      %v762 = vsel %vm436, %v261, 0
      %v765 = vsel %vm436, %v263, 0
      %v768 = vsel %vm436, %v265, 0
      %v771 = vsel %vm436, %v267, 0
      %v774 = vsel %vm436, %v269, 0
      %v777 = vsel %vm436, %v271, 0
      %v780 = vsel %vm436, %v273, 0
      %v783 = vsel %vm436, %v275, 0
      %v786 = vsel %vm436, %v277, 0
      %v789 = vsel %vm436, %v279, 0
      %v792 = vsel %vm436, %v281, 0
      %v795 = vsel %vm436, %v283, 0
      %v798 = vsel %vm436, %v285, 0
      %v801 = vsel %vm436, %v287, 0
      %v804 = vsel %vm436, %v289, 0
      %v807 = vsel %vm436, %v291, 0
      %v810 = vsel %vm436, %v293, 0
      %v813 = vsel %vm436, %v295, 0
      %v816 = vsel %vm436, %v297, 0
      %v819 = vsel %vm436, %v299, 0
      %v822 = vsel %vm436, %v301, 0
      %v825 = vsel %vm436, %v303, 0
      %v828 = vsel %vm436, %v305, 0
      %v831 = vsel %vm436, %v307, 0
      %v834 = vsel %vm436, %v309, 0
      %v837 = vsel %vm436, %v311, 0
      %v840 = vsel %vm436, %v313, 0
      %v843 = vsel %vm436, %v315, 0
      %v846 = vsel %vm436, %v317, 0
      %v849 = vsel %vm436, %v319, 0
      %v852 = vsel %vm436, %v321, 0
      %854 = vmatprep.subr.mxu0 0.0
      %855 = vmatpush1.msra.mxu0 %v337
      %856 = vmatprep.subr.mxu0 0.0
      %857 = vmatpush1.msra.mxu0 %v336
      %858 = vmatprep.subr.mxu0 0.0
      %859 = vmatpush1.msra.mxu0 %v335
      %860 = vmatprep.subr.mxu0 0.0
      %861 = vmatpush1.msra.mxu0 %v334
      %862 = vmatprep.subr.mxu0 0.0
      %863 = vmatpush1.msra.mxu0 %v333
      %864 = vmatprep.subr.mxu0 0.0
      %865 = vmatpush1.msra.mxu0 %v332
      %866 = vmatprep.subr.mxu0 0.0
      %867 = vmatpush1.msra.mxu0 %v331
      %868 = vmatprep.subr.mxu0 0.0
      %869 = vmatpush1.msra.mxu0 %v330
      %870 = vmatprep.subr.mxu0 0.0
      %871 = vmatpush1.msra.mxu0 %v329
      %872 = vmatprep.subr.mxu0 0.0
      %873 = vmatpush1.msra.mxu0 %v328
      %874 = vmatprep.subr.mxu0 0.0
      %875 = vmatpush1.msra.mxu0 %v327
      %876 = vmatprep.subr.mxu0 0.0
      %877 = vmatpush1.msra.mxu0 %v326
      %878 = vmatprep.subr.mxu0 0.0
      %879 = vmatpush1.msra.mxu0 %v325
      %880 = vmatprep.subr.mxu0 0.0
      %881 = vmatpush1.msra.mxu0 %v324
      %882 = vmatprep.subr.mxu0 0.0
      %883 = vmatpush1.msra.mxu0 %v323
      %884 = vmatprep.subr.mxu0 0.0
      %885 = vmatpush1.msra.mxu0 %v322
      %886 = vmatprep.subr.mxu0 0.0
      %887 = vmatpush2.msra.mxu0 0.0
      %888 = vmatprep.subr.mxu0 0.0
      %889 = vmatpush2.msra.mxu0 0.0
      %890 = vmatprep.subr.mxu0 0.0
      %891 = vmatpush2.msra.mxu0 0.0
      %892 = vmatprep.subr.mxu0 0.0
      %893 = vmatpush2.msra.mxu0 0.0
      %894 = vmatprep.subr.mxu0 0.0
      %895 = vmatpush2.msra.mxu0 0.0
      %896 = vmatprep.subr.mxu0 0.0
      %897 = vmatpush2.msra.mxu0 0.0
      %898 = vmatprep.subr.mxu0 0.0
      %899 = vmatpush2.msra.mxu0 0.0
      %900 = vmatprep.subr.mxu0 0.0
      %901 = vmatpush2.msra.mxu0 0.0
      %902 = vmatprep.subr.mxu0 0.0
      %903 = vmatpush2.msra.mxu0 %v345
      %904 = vmatprep.subr.mxu0 0.0
      %905 = vmatpush2.msra.mxu0 %v344
      %906 = vmatprep.subr.mxu0 0.0
      %907 = vmatpush2.msra.mxu0 %v343
      %908 = vmatprep.subr.mxu0 0.0
      %909 = vmatpush2.msra.mxu0 %v342
      %910 = vmatprep.subr.mxu0 0.0
      %911 = vmatpush2.msra.mxu0 %v341
      %912 = vmatprep.subr.mxu0 0.0
      %913 = vmatpush2.msra.mxu0 %v340
      %914 = vmatprep.subr.mxu0 0.0
      %915 = vmatpush2.msra.mxu0 %v339
      %916 = vmatprep.subr.mxu0 0.0
      %917 = vmatpush2.msra.mxu0 %v338
      %918 = vmatprep.mubr.f32.mxu0 %v759
      %919 = vmatmul.mubr.f32.gmra.mxu0 %v258
      %v920 = vpop.f32.mrf.mxu0
      %v921 = vadd.f32 %v600, %v920
      %v922 = vpop.f32.mrf.mxu0
      %923 = vmatprep.mubr.f32.mxu0 %v762
      %924 = vmatmul.mubr.f32.gmra.mxu0 %v260
      %v925 = vpop.f32.mrf.mxu0
      %v926 = vadd.f32 %v605, %v925
      %v927 = vpop.f32.mrf.mxu0
      %928 = vmatprep.mubr.f32.mxu0 %v765
      %929 = vmatmul.mubr.f32.gmra.mxu0 %v262
      %v930 = vpop.f32.mrf.mxu0
      %v931 = vadd.f32 %v610, %v930
      %v932 = vpop.f32.mrf.mxu0
      %933 = vmatprep.mubr.f32.mxu0 %v768
      %934 = vmatmul.mubr.f32.gmra.mxu0 %v264
      %v935 = vpop.f32.mrf.mxu0
      %v936 = vadd.f32 %v615, %v935
      %v937 = vpop.f32.mrf.mxu0
      %938 = vmatprep.mubr.f32.mxu0 %v771
      %939 = vmatmul.mubr.f32.gmra.mxu0 %v266
      %v940 = vpop.f32.mrf.mxu0
      %v941 = vadd.f32 %v620, %v940
      %v942 = vpop.f32.mrf.mxu0
      %943 = vmatprep.mubr.f32.mxu0 %v774
      %944 = vmatmul.mubr.f32.gmra.mxu0 %v268
      %v945 = vpop.f32.mrf.mxu0
      %v946 = vadd.f32 %v625, %v945
      %v947 = vpop.f32.mrf.mxu0
      %948 = vmatprep.mubr.f32.mxu0 %v777
      %949 = vmatmul.mubr.f32.gmra.mxu0 %v270
      %v950 = vpop.f32.mrf.mxu0
      %v951 = vadd.f32 %v630, %v950
      %v952 = vpop.f32.mrf.mxu0
      %953 = vmatprep.mubr.f32.mxu0 %v780
      %954 = vmatmul.mubr.f32.gmra.mxu0 %v272
      %v955 = vpop.f32.mrf.mxu0
      %v956 = vadd.f32 %v635, %v955
      %v957 = vpop.f32.mrf.mxu0
      %958 = vmatprep.mubr.f32.mxu0 %v783
      %959 = vmatmul.mubr.f32.gmra.mxu0 %v274
      %v960 = vpop.f32.mrf.mxu0
      %v961 = vadd.f32 %v640, %v960
      %v962 = vpop.f32.mrf.mxu0
      %963 = vmatprep.mubr.f32.mxu0 %v786
      %964 = vmatmul.mubr.f32.gmra.mxu0 %v276
      %v965 = vpop.f32.mrf.mxu0
      %v966 = vadd.f32 %v645, %v965
      %v967 = vpop.f32.mrf.mxu0
      %968 = vmatprep.mubr.f32.mxu0 %v789
      %969 = vmatmul.mubr.f32.gmra.mxu0 %v278
      %v970 = vpop.f32.mrf.mxu0
      %v971 = vadd.f32 %v650, %v970
      %v972 = vpop.f32.mrf.mxu0
      %973 = vmatprep.mubr.f32.mxu0 %v792
      %974 = vmatmul.mubr.f32.gmra.mxu0 %v280
      %v975 = vpop.f32.mrf.mxu0
      %v976 = vadd.f32 %v655, %v975
      %v977 = vpop.f32.mrf.mxu0
      %978 = vmatprep.mubr.f32.mxu0 %v795
      %979 = vmatmul.mubr.f32.gmra.mxu0 %v282
      %v980 = vpop.f32.mrf.mxu0
      %v981 = vadd.f32 %v660, %v980
      %v982 = vpop.f32.mrf.mxu0
      %983 = vmatprep.mubr.f32.mxu0 %v798
      %984 = vmatmul.mubr.f32.gmra.mxu0 %v284
      %v985 = vpop.f32.mrf.mxu0
      %v986 = vadd.f32 %v665, %v985
      %v987 = vpop.f32.mrf.mxu0
      %988 = vmatprep.mubr.f32.mxu0 %v801
      %989 = vmatmul.mubr.f32.gmra.mxu0 %v286
      %v990 = vpop.f32.mrf.mxu0
      %v991 = vadd.f32 %v670, %v990
      %v992 = vpop.f32.mrf.mxu0
      %993 = vmatprep.mubr.f32.mxu0 %v804
      %994 = vmatmul.mubr.f32.gmra.mxu0 %v288
      %v995 = vpop.f32.mrf.mxu0
      %v996 = vadd.f32 %v675, %v995
      %v997 = vpop.f32.mrf.mxu0
      %998 = vmatprep.mubr.f32.mxu0 %v807
      %999 = vmatmul.mubr.f32.gmra.mxu0 %v290
      %v1000 = vpop.f32.mrf.mxu0
      %v1001 = vadd.f32 %v680, %v1000
      %v1002 = vpop.f32.mrf.mxu0
      %1003 = vmatprep.mubr.f32.mxu0 %v810
      %1004 = vmatmul.mubr.f32.gmra.mxu0 %v292
      %v1005 = vpop.f32.mrf.mxu0
      %v1006 = vadd.f32 %v685, %v1005
      %v1007 = vpop.f32.mrf.mxu0
      %1008 = vmatprep.mubr.f32.mxu0 %v813
      %1009 = vmatmul.mubr.f32.gmra.mxu0 %v294
      %v1010 = vpop.f32.mrf.mxu0
      %v1011 = vadd.f32 %v690, %v1010
      %v1012 = vpop.f32.mrf.mxu0
      %1013 = vmatprep.mubr.f32.mxu0 %v816
      %1014 = vmatmul.mubr.f32.gmra.mxu0 %v296
      %v1015 = vpop.f32.mrf.mxu0
      %v1016 = vadd.f32 %v695, %v1015
      %v1017 = vpop.f32.mrf.mxu0
      %1018 = vmatprep.mubr.f32.mxu0 %v819
      %1019 = vmatmul.mubr.f32.gmra.mxu0 %v298
      %v1020 = vpop.f32.mrf.mxu0
      %v1021 = vadd.f32 %v700, %v1020
      %v1022 = vpop.f32.mrf.mxu0
      %1023 = vmatprep.mubr.f32.mxu0 %v822
      %1024 = vmatmul.mubr.f32.gmra.mxu0 %v300
      %v1025 = vpop.f32.mrf.mxu0
      %v1026 = vadd.f32 %v705, %v1025
      %v1027 = vpop.f32.mrf.mxu0
      %1028 = vmatprep.mubr.f32.mxu0 %v825
      %1029 = vmatmul.mubr.f32.gmra.mxu0 %v302
      %v1030 = vpop.f32.mrf.mxu0
      %v1031 = vadd.f32 %v710, %v1030
      %v1032 = vpop.f32.mrf.mxu0
      %1033 = vmatprep.mubr.f32.mxu0 %v828
      %1034 = vmatmul.mubr.f32.gmra.mxu0 %v304
      %v1035 = vpop.f32.mrf.mxu0
      %v1036 = vadd.f32 %v715, %v1035
      %v1037 = vpop.f32.mrf.mxu0
      %1038 = vmatprep.mubr.f32.mxu0 %v831
      %1039 = vmatmul.mubr.f32.gmra.mxu0 %v306
      %v1040 = vpop.f32.mrf.mxu0
      %v1041 = vadd.f32 %v720, %v1040
      %v1042 = vpop.f32.mrf.mxu0
      %1043 = vmatprep.mubr.f32.mxu0 %v834
      %1044 = vmatmul.mubr.f32.gmra.mxu0 %v308
      %v1045 = vpop.f32.mrf.mxu0
      %v1046 = vadd.f32 %v725, %v1045
      %v1047 = vpop.f32.mrf.mxu0
      %1048 = vmatprep.mubr.f32.mxu0 %v837
      %1049 = vmatmul.mubr.f32.gmra.mxu0 %v310
      %v1050 = vpop.f32.mrf.mxu0
      %v1051 = vadd.f32 %v730, %v1050
      %v1052 = vpop.f32.mrf.mxu0
      %1053 = vmatprep.mubr.f32.mxu0 %v840
      %1054 = vmatmul.mubr.f32.gmra.mxu0 %v312
      %v1055 = vpop.f32.mrf.mxu0
      %v1056 = vadd.f32 %v735, %v1055
      %v1057 = vpop.f32.mrf.mxu0
      %1058 = vmatprep.mubr.f32.mxu0 %v843
      %1059 = vmatmul.mubr.f32.gmra.mxu0 %v314
      %v1060 = vpop.f32.mrf.mxu0
      %v1061 = vadd.f32 %v740, %v1060
      %v1062 = vpop.f32.mrf.mxu0
      %1063 = vmatprep.mubr.f32.mxu0 %v846
      %1064 = vmatmul.mubr.f32.gmra.mxu0 %v316
      %v1065 = vpop.f32.mrf.mxu0
      %v1066 = vadd.f32 %v745, %v1065
      %v1067 = vpop.f32.mrf.mxu0
      %1068 = vmatprep.mubr.f32.mxu0 %v849
      %1069 = vmatmul.mubr.f32.gmra.mxu0 %v318
      %v1070 = vpop.f32.mrf.mxu0
      %v1071 = vadd.f32 %v750, %v1070
      %v1072 = vpop.f32.mrf.mxu0
      %1073 = vmatprep.mubr.f32.mxu0 %v852
      %1074 = vmatmul.mubr.f32.gmra.mxu0 %v320
      %v1075 = vpop.f32.mrf.mxu0
      %v1076 = vadd.f32 %v755, %v1075
      %v1077 = vpop.f32.mrf.mxu0
      %1078 = vdwg.mxu0
      %s1079 = scalar_lea.vmem %s236, 64
      %v1080 = vld [vmem:[%s1079] sm:$0xff]
      %v1081 = vld [vmem:[%s1079 + $0x8] sm:$0xff]
      %v1082 = vld [vmem:[%s1079 + $0x10] sm:$0xff]
      %v1083 = vld [vmem:[%s1079 + $0x18] sm:$0xff]
      %v1084 = vld [vmem:[%s1079 + $0x20] sm:$0xff]
      %v1085 = vld [vmem:[%s1079 + $0x28] sm:$0xff]
      %v1086 = vld [vmem:[%s1079 + $0x30] sm:$0xff]
      %v1087 = vld [vmem:[%s1079 + $0x38] sm:$0xff]
      %v1088 = vld [vmem:[%s1079 + $0x40] sm:$0xff]
      %v1089 = vld [vmem:[%s1079 + $0x48] sm:$0xff]
      %v1090 = vld [vmem:[%s1079 + $0x50] sm:$0xff]
      %v1091 = vld [vmem:[%s1079 + $0x58] sm:$0xff]
      %v1092 = vld [vmem:[%s1079 + $0x60] sm:$0xff]
      %v1093 = vld [vmem:[%s1079 + $0x68] sm:$0xff]
      %v1094 = vld [vmem:[%s1079 + $0x70] sm:$0xff]
      %v1095 = vld [vmem:[%s1079 + $0x78] sm:$0xff]
      %v1096 = vld [vmem:[%s1079 + $0x80] sm:$0xff]
      %v1097 = vld [vmem:[%s1079 + $0x88] sm:$0xff]
      %v1098 = vld [vmem:[%s1079 + $0x90] sm:$0xff]
      %v1099 = vld [vmem:[%s1079 + $0x98] sm:$0xff]
      %v1100 = vld [vmem:[%s1079 + $0xa0] sm:$0xff]
      %v1101 = vld [vmem:[%s1079 + $0xa8] sm:$0xff]
      %v1102 = vld [vmem:[%s1079 + $0xb0] sm:$0xff]
      %v1103 = vld [vmem:[%s1079 + $0xb8] sm:$0xff]
      %v1104 = vld [vmem:[%s1079 + $0xc0] sm:$0xff]
      %v1105 = vld [vmem:[%s1079 + $0xc8] sm:$0xff]
      %v1106 = vld [vmem:[%s1079 + $0xd0] sm:$0xff]
      %v1107 = vld [vmem:[%s1079 + $0xd8] sm:$0xff]
      %v1108 = vld [vmem:[%s1079 + $0xe0] sm:$0xff]
      %v1109 = vld [vmem:[%s1079 + $0xe8] sm:$0xff]
      %v1110 = vld [vmem:[%s1079 + $0xf0] sm:$0xff]
      %v1111 = vld [vmem:[%s1079 + $0xf8] sm:$0xff]
      %v1112 = vld [vmem:[%s1079 + $0x100] sm:$0xff]
      %v1113 = vld [vmem:[%s1079 + $0x108] sm:$0xff]
      %v1114 = vld [vmem:[%s1079 + $0x110] sm:$0xff]
      %v1115 = vld [vmem:[%s1079 + $0x118] sm:$0xff]
      %v1116 = vld [vmem:[%s1079 + $0x120] sm:$0xff]
      %v1117 = vld [vmem:[%s1079 + $0x128] sm:$0xff]
      %v1118 = vld [vmem:[%s1079 + $0x130] sm:$0xff]
      %v1119 = vld [vmem:[%s1079 + $0x138] sm:$0xff]
      %v1120 = vld [vmem:[%s1079 + $0x140] sm:$0xff]
      %v1121 = vld [vmem:[%s1079 + $0x148] sm:$0xff]
      %v1122 = vld [vmem:[%s1079 + $0x150] sm:$0xff]
      %v1123 = vld [vmem:[%s1079 + $0x158] sm:$0xff]
      %v1124 = vld [vmem:[%s1079 + $0x160] sm:$0xff]
      %v1125 = vld [vmem:[%s1079 + $0x168] sm:$0xff]
      %v1126 = vld [vmem:[%s1079 + $0x170] sm:$0xff]
      %v1127 = vld [vmem:[%s1079 + $0x178] sm:$0xff]
      %v1128 = vld [vmem:[%s1079 + $0x180] sm:$0xff]
      %v1129 = vld [vmem:[%s1079 + $0x188] sm:$0xff]
      %v1130 = vld [vmem:[%s1079 + $0x190] sm:$0xff]
      %v1131 = vld [vmem:[%s1079 + $0x198] sm:$0xff]
      %v1132 = vld [vmem:[%s1079 + $0x1a0] sm:$0xff]
      %v1133 = vld [vmem:[%s1079 + $0x1a8] sm:$0xff]
      %v1134 = vld [vmem:[%s1079 + $0x1b0] sm:$0xff]
      %v1135 = vld [vmem:[%s1079 + $0x1b8] sm:$0xff]
      %v1136 = vld [vmem:[%s1079 + $0x1c0] sm:$0xff]
      %v1137 = vld [vmem:[%s1079 + $0x1c8] sm:$0xff]
      %v1138 = vld [vmem:[%s1079 + $0x1d0] sm:$0xff]
      %v1139 = vld [vmem:[%s1079 + $0x1d8] sm:$0xff]
      %v1140 = vld [vmem:[%s1079 + $0x1e0] sm:$0xff]
      %v1141 = vld [vmem:[%s1079 + $0x1e8] sm:$0xff]
      %v1142 = vld [vmem:[%s1079 + $0x1f0] sm:$0xff]
      %v1143 = vld [vmem:[%s1079 + $0x1f8] sm:$0xff]
      %s1144 = scalar_lea.vmem %s1, 384
      %v1145 = vld [vmem:[%s1144] sm:$0xff]
      %v1146 = vld [vmem:[%s1144 + $0x8] sm:$0xff]
      %v1147 = vld [vmem:[%s1144 + $0x10] sm:$0xff]
      %v1148 = vld [vmem:[%s1144 + $0x18] sm:$0xff]
      %v1149 = vld [vmem:[%s1144 + $0x20] sm:$0xff]
      %v1150 = vld [vmem:[%s1144 + $0x28] sm:$0xff]
      %v1151 = vld [vmem:[%s1144 + $0x30] sm:$0xff]
      %v1152 = vld [vmem:[%s1144 + $0x38] sm:$0xff]
      %v1153 = vld [vmem:[%s1144 + $0x40] sm:$0xff]
      %v1154 = vld [vmem:[%s1144 + $0x48] sm:$0xff]
      %v1155 = vld [vmem:[%s1144 + $0x50] sm:$0xff]
      %v1156 = vld [vmem:[%s1144 + $0x58] sm:$0xff]
      %v1157 = vld [vmem:[%s1144 + $0x60] sm:$0xff]
      %v1158 = vld [vmem:[%s1144 + $0x68] sm:$0xff]
      %v1159 = vld [vmem:[%s1144 + $0x70] sm:$0xff]
      %v1160 = vld [vmem:[%s1144 + $0x78] sm:$0xff]
      %v1161 = vld [vmem:[%s1144 + $0x80] sm:$0xff]
      %v1162 = vld [vmem:[%s1144 + $0x88] sm:$0xff]
      %v1163 = vld [vmem:[%s1144 + $0x90] sm:$0xff]
      %v1164 = vld [vmem:[%s1144 + $0x98] sm:$0xff]
      %v1165 = vld [vmem:[%s1144 + $0xa0] sm:$0xff]
      %v1166 = vld [vmem:[%s1144 + $0xa8] sm:$0xff]
      %v1167 = vld [vmem:[%s1144 + $0xb0] sm:$0xff]
      %v1168 = vld [vmem:[%s1144 + $0xb8] sm:$0xff]
      %v1170 = vsel %vm436, %v1081, 0
      %v1173 = vsel %vm436, %v1083, 0
      %v1176 = vsel %vm436, %v1085, 0
      %v1179 = vsel %vm436, %v1087, 0
      %v1182 = vsel %vm436, %v1089, 0
      %v1185 = vsel %vm436, %v1091, 0
      %v1188 = vsel %vm436, %v1093, 0
      %v1191 = vsel %vm436, %v1095, 0
      %v1194 = vsel %vm436, %v1097, 0
      %v1197 = vsel %vm436, %v1099, 0
      %v1200 = vsel %vm436, %v1101, 0
      %v1203 = vsel %vm436, %v1103, 0
      %v1206 = vsel %vm436, %v1105, 0
      %v1209 = vsel %vm436, %v1107, 0
      %v1212 = vsel %vm436, %v1109, 0
      %v1215 = vsel %vm436, %v1111, 0
      %v1218 = vsel %vm436, %v1113, 0
      %v1221 = vsel %vm436, %v1115, 0
      %v1224 = vsel %vm436, %v1117, 0
      %v1227 = vsel %vm436, %v1119, 0
      %v1230 = vsel %vm436, %v1121, 0
      %v1233 = vsel %vm436, %v1123, 0
      %v1236 = vsel %vm436, %v1125, 0
      %v1239 = vsel %vm436, %v1127, 0
      %v1242 = vsel %vm436, %v1129, 0
      %v1245 = vsel %vm436, %v1131, 0
      %v1248 = vsel %vm436, %v1133, 0
      %v1251 = vsel %vm436, %v1135, 0
      %v1254 = vsel %vm436, %v1137, 0
      %v1257 = vsel %vm436, %v1139, 0
      %v1260 = vsel %vm436, %v1141, 0
      %v1263 = vsel %vm436, %v1143, 0
      %1265 = vmatprep.subr.mxu0 0.0
      %1266 = vmatpush1.msra.mxu0 %v1160
      %1267 = vmatprep.subr.mxu0 0.0
      %1268 = vmatpush1.msra.mxu0 %v1159
      %1269 = vmatprep.subr.mxu0 0.0
      %1270 = vmatpush1.msra.mxu0 %v1158
      %1271 = vmatprep.subr.mxu0 0.0
      %1272 = vmatpush1.msra.mxu0 %v1157
      %1273 = vmatprep.subr.mxu0 0.0
      %1274 = vmatpush1.msra.mxu0 %v1156
      %1275 = vmatprep.subr.mxu0 0.0
      %1276 = vmatpush1.msra.mxu0 %v1155
      %1277 = vmatprep.subr.mxu0 0.0
      %1278 = vmatpush1.msra.mxu0 %v1154
      %1279 = vmatprep.subr.mxu0 0.0
      %1280 = vmatpush1.msra.mxu0 %v1153
      %1281 = vmatprep.subr.mxu0 0.0
      %1282 = vmatpush1.msra.mxu0 %v1152
      %1283 = vmatprep.subr.mxu0 0.0
      %1284 = vmatpush1.msra.mxu0 %v1151
      %1285 = vmatprep.subr.mxu0 0.0
      %1286 = vmatpush1.msra.mxu0 %v1150
      %1287 = vmatprep.subr.mxu0 0.0
      %1288 = vmatpush1.msra.mxu0 %v1149
      %1289 = vmatprep.subr.mxu0 0.0
      %1290 = vmatpush1.msra.mxu0 %v1148
      %1291 = vmatprep.subr.mxu0 0.0
      %1292 = vmatpush1.msra.mxu0 %v1147
      %1293 = vmatprep.subr.mxu0 0.0
      %1294 = vmatpush1.msra.mxu0 %v1146
      %1295 = vmatprep.subr.mxu0 0.0
      %1296 = vmatpush1.msra.mxu0 %v1145
      %1297 = vmatprep.subr.mxu0 0.0
      %1298 = vmatpush2.msra.mxu0 0.0
      %1299 = vmatprep.subr.mxu0 0.0
      %1300 = vmatpush2.msra.mxu0 0.0
      %1301 = vmatprep.subr.mxu0 0.0
      %1302 = vmatpush2.msra.mxu0 0.0
      %1303 = vmatprep.subr.mxu0 0.0
      %1304 = vmatpush2.msra.mxu0 0.0
      %1305 = vmatprep.subr.mxu0 0.0
      %1306 = vmatpush2.msra.mxu0 0.0
      %1307 = vmatprep.subr.mxu0 0.0
      %1308 = vmatpush2.msra.mxu0 0.0
      %1309 = vmatprep.subr.mxu0 0.0
      %1310 = vmatpush2.msra.mxu0 0.0
      %1311 = vmatprep.subr.mxu0 0.0
      %1312 = vmatpush2.msra.mxu0 0.0
      %1313 = vmatprep.subr.mxu0 0.0
      %1314 = vmatpush2.msra.mxu0 %v1168
      %1315 = vmatprep.subr.mxu0 0.0
      %1316 = vmatpush2.msra.mxu0 %v1167
      %1317 = vmatprep.subr.mxu0 0.0
      %1318 = vmatpush2.msra.mxu0 %v1166
      %1319 = vmatprep.subr.mxu0 0.0
      %1320 = vmatpush2.msra.mxu0 %v1165
      %1321 = vmatprep.subr.mxu0 0.0
      %1322 = vmatpush2.msra.mxu0 %v1164
      %1323 = vmatprep.subr.mxu0 0.0
      %1324 = vmatpush2.msra.mxu0 %v1163
      %1325 = vmatprep.subr.mxu0 0.0
      %1326 = vmatpush2.msra.mxu0 %v1162
      %1327 = vmatprep.subr.mxu0 0.0
      %1328 = vmatpush2.msra.mxu0 %v1161
      %1329 = vmatprep.mubr.f32.mxu0 %v1170
      %1330 = vmatmul.mubr.f32.gmra.mxu0 %v1080
      %v1331 = vpop.f32.mrf.mxu0
      %v1332 = vadd.f32 0.0, %v1331
      %v1333 = vpop.f32.mrf.mxu0
      %1334 = vmatprep.mubr.f32.mxu0 %v1173
      %1335 = vmatmul.mubr.f32.gmra.mxu0 %v1082
      %v1336 = vpop.f32.mrf.mxu0
      %v1337 = vadd.f32 0.0, %v1336
      %v1338 = vpop.f32.mrf.mxu0
      %1339 = vmatprep.mubr.f32.mxu0 %v1176
      %1340 = vmatmul.mubr.f32.gmra.mxu0 %v1084
      %v1341 = vpop.f32.mrf.mxu0
      %v1342 = vadd.f32 0.0, %v1341
      %v1343 = vpop.f32.mrf.mxu0
      %1344 = vmatprep.mubr.f32.mxu0 %v1179
      %1345 = vmatmul.mubr.f32.gmra.mxu0 %v1086
      %v1346 = vpop.f32.mrf.mxu0
      %v1347 = vadd.f32 0.0, %v1346
      %v1348 = vpop.f32.mrf.mxu0
      %1349 = vmatprep.mubr.f32.mxu0 %v1182
      %1350 = vmatmul.mubr.f32.gmra.mxu0 %v1088
      %v1351 = vpop.f32.mrf.mxu0
      %v1352 = vadd.f32 0.0, %v1351
      %v1353 = vpop.f32.mrf.mxu0
      %1354 = vmatprep.mubr.f32.mxu0 %v1185
      %1355 = vmatmul.mubr.f32.gmra.mxu0 %v1090
      %v1356 = vpop.f32.mrf.mxu0
      %v1357 = vadd.f32 0.0, %v1356
      %v1358 = vpop.f32.mrf.mxu0
      %1359 = vmatprep.mubr.f32.mxu0 %v1188
      %1360 = vmatmul.mubr.f32.gmra.mxu0 %v1092
      %v1361 = vpop.f32.mrf.mxu0
      %v1362 = vadd.f32 0.0, %v1361
      %v1363 = vpop.f32.mrf.mxu0
      %1364 = vmatprep.mubr.f32.mxu0 %v1191
      %1365 = vmatmul.mubr.f32.gmra.mxu0 %v1094
      %v1366 = vpop.f32.mrf.mxu0
      %v1367 = vadd.f32 0.0, %v1366
      %v1368 = vpop.f32.mrf.mxu0
      %1369 = vmatprep.mubr.f32.mxu0 %v1194
      %1370 = vmatmul.mubr.f32.gmra.mxu0 %v1096
      %v1371 = vpop.f32.mrf.mxu0
      %v1372 = vadd.f32 0.0, %v1371
      %v1373 = vpop.f32.mrf.mxu0
      %1374 = vmatprep.mubr.f32.mxu0 %v1197
      %1375 = vmatmul.mubr.f32.gmra.mxu0 %v1098
      %v1376 = vpop.f32.mrf.mxu0
      %v1377 = vadd.f32 0.0, %v1376
      %v1378 = vpop.f32.mrf.mxu0
      %1379 = vmatprep.mubr.f32.mxu0 %v1200
      %1380 = vmatmul.mubr.f32.gmra.mxu0 %v1100
      %v1381 = vpop.f32.mrf.mxu0
      %v1382 = vadd.f32 0.0, %v1381
      %v1383 = vpop.f32.mrf.mxu0
      %1384 = vmatprep.mubr.f32.mxu0 %v1203
      %1385 = vmatmul.mubr.f32.gmra.mxu0 %v1102
      %v1386 = vpop.f32.mrf.mxu0
      %v1387 = vadd.f32 0.0, %v1386
      %v1388 = vpop.f32.mrf.mxu0
      %1389 = vmatprep.mubr.f32.mxu0 %v1206
      %1390 = vmatmul.mubr.f32.gmra.mxu0 %v1104
      %v1391 = vpop.f32.mrf.mxu0
      %v1392 = vadd.f32 0.0, %v1391
      %v1393 = vpop.f32.mrf.mxu0
      %1394 = vmatprep.mubr.f32.mxu0 %v1209
      %1395 = vmatmul.mubr.f32.gmra.mxu0 %v1106
      %v1396 = vpop.f32.mrf.mxu0
      %v1397 = vadd.f32 0.0, %v1396
      %v1398 = vpop.f32.mrf.mxu0
      %1399 = vmatprep.mubr.f32.mxu0 %v1212
      %1400 = vmatmul.mubr.f32.gmra.mxu0 %v1108
      %v1401 = vpop.f32.mrf.mxu0
      %v1402 = vadd.f32 0.0, %v1401
      %v1403 = vpop.f32.mrf.mxu0
      %1404 = vmatprep.mubr.f32.mxu0 %v1215
      %1405 = vmatmul.mubr.f32.gmra.mxu0 %v1110
      %v1406 = vpop.f32.mrf.mxu0
      %v1407 = vadd.f32 0.0, %v1406
      %v1408 = vpop.f32.mrf.mxu0
      %1409 = vmatprep.mubr.f32.mxu0 %v1218
      %1410 = vmatmul.mubr.f32.gmra.mxu0 %v1112
      %v1411 = vpop.f32.mrf.mxu0
      %v1412 = vadd.f32 0.0, %v1411
      %v1413 = vpop.f32.mrf.mxu0
      %1414 = vmatprep.mubr.f32.mxu0 %v1221
      %1415 = vmatmul.mubr.f32.gmra.mxu0 %v1114
      %v1416 = vpop.f32.mrf.mxu0
      %v1417 = vadd.f32 0.0, %v1416
      %v1418 = vpop.f32.mrf.mxu0
      %1419 = vmatprep.mubr.f32.mxu0 %v1224
      %1420 = vmatmul.mubr.f32.gmra.mxu0 %v1116
      %v1421 = vpop.f32.mrf.mxu0
      %v1422 = vadd.f32 0.0, %v1421
      %v1423 = vpop.f32.mrf.mxu0
      %1424 = vmatprep.mubr.f32.mxu0 %v1227
      %1425 = vmatmul.mubr.f32.gmra.mxu0 %v1118
      %v1426 = vpop.f32.mrf.mxu0
      %v1427 = vadd.f32 0.0, %v1426
      %v1428 = vpop.f32.mrf.mxu0
      %1429 = vmatprep.mubr.f32.mxu0 %v1230
      %1430 = vmatmul.mubr.f32.gmra.mxu0 %v1120
      %v1431 = vpop.f32.mrf.mxu0
      %v1432 = vadd.f32 0.0, %v1431
      %v1433 = vpop.f32.mrf.mxu0
      %1434 = vmatprep.mubr.f32.mxu0 %v1233
      %1435 = vmatmul.mubr.f32.gmra.mxu0 %v1122
      %v1436 = vpop.f32.mrf.mxu0
      %v1437 = vadd.f32 0.0, %v1436
      %v1438 = vpop.f32.mrf.mxu0
      %1439 = vmatprep.mubr.f32.mxu0 %v1236
      %1440 = vmatmul.mubr.f32.gmra.mxu0 %v1124
      %v1441 = vpop.f32.mrf.mxu0
      %v1442 = vadd.f32 0.0, %v1441
      %v1443 = vpop.f32.mrf.mxu0
      %1444 = vmatprep.mubr.f32.mxu0 %v1239
      %1445 = vmatmul.mubr.f32.gmra.mxu0 %v1126
      %v1446 = vpop.f32.mrf.mxu0
      %v1447 = vadd.f32 0.0, %v1446
      %v1448 = vpop.f32.mrf.mxu0
      %1449 = vmatprep.mubr.f32.mxu0 %v1242
      %1450 = vmatmul.mubr.f32.gmra.mxu0 %v1128
      %v1451 = vpop.f32.mrf.mxu0
      %v1452 = vadd.f32 0.0, %v1451
      %v1453 = vpop.f32.mrf.mxu0
      %1454 = vmatprep.mubr.f32.mxu0 %v1245
      %1455 = vmatmul.mubr.f32.gmra.mxu0 %v1130
      %v1456 = vpop.f32.mrf.mxu0
      %v1457 = vadd.f32 0.0, %v1456
      %v1458 = vpop.f32.mrf.mxu0
      %1459 = vmatprep.mubr.f32.mxu0 %v1248
      %1460 = vmatmul.mubr.f32.gmra.mxu0 %v1132
      %v1461 = vpop.f32.mrf.mxu0
      %v1462 = vadd.f32 0.0, %v1461
      %v1463 = vpop.f32.mrf.mxu0
      %1464 = vmatprep.mubr.f32.mxu0 %v1251
      %1465 = vmatmul.mubr.f32.gmra.mxu0 %v1134
      %v1466 = vpop.f32.mrf.mxu0
      %v1467 = vadd.f32 0.0, %v1466
      %v1468 = vpop.f32.mrf.mxu0
      %1469 = vmatprep.mubr.f32.mxu0 %v1254
      %1470 = vmatmul.mubr.f32.gmra.mxu0 %v1136
      %v1471 = vpop.f32.mrf.mxu0
      %v1472 = vadd.f32 0.0, %v1471
      %v1473 = vpop.f32.mrf.mxu0
      %1474 = vmatprep.mubr.f32.mxu0 %v1257
      %1475 = vmatmul.mubr.f32.gmra.mxu0 %v1138
      %v1476 = vpop.f32.mrf.mxu0
      %v1477 = vadd.f32 0.0, %v1476
      %v1478 = vpop.f32.mrf.mxu0
      %1479 = vmatprep.mubr.f32.mxu0 %v1260
      %1480 = vmatmul.mubr.f32.gmra.mxu0 %v1140
      %v1481 = vpop.f32.mrf.mxu0
      %v1482 = vadd.f32 0.0, %v1481
      %v1483 = vpop.f32.mrf.mxu0
      %1484 = vmatprep.mubr.f32.mxu0 %v1263
      %1485 = vmatmul.mubr.f32.gmra.mxu0 %v1142
      %v1486 = vpop.f32.mrf.mxu0
      %v1487 = vadd.f32 0.0, %v1486
      %v1488 = vpop.f32.mrf.mxu0
      %1489 = vdwg.mxu0
      %v1490 = vadd.f32 %v921, %v1332
      %v1491 = vadd.f32 %v926, %v1337
      %v1492 = vadd.f32 %v931, %v1342
      %v1493 = vadd.f32 %v936, %v1347
      %v1494 = vadd.f32 %v941, %v1352
      %v1495 = vadd.f32 %v946, %v1357
      %v1496 = vadd.f32 %v951, %v1362
      %v1497 = vadd.f32 %v956, %v1367
      %v1498 = vadd.f32 %v961, %v1372
      %v1499 = vadd.f32 %v966, %v1377
      %v1500 = vadd.f32 %v971, %v1382
      %v1501 = vadd.f32 %v976, %v1387
      %v1502 = vadd.f32 %v981, %v1392
      %v1503 = vadd.f32 %v986, %v1397
      %v1504 = vadd.f32 %v991, %v1402
      %v1505 = vadd.f32 %v996, %v1407
      %v1506 = vadd.f32 %v1001, %v1412
      %v1507 = vadd.f32 %v1006, %v1417
      %v1508 = vadd.f32 %v1011, %v1422
      %v1509 = vadd.f32 %v1016, %v1427
      %v1510 = vadd.f32 %v1021, %v1432
      %v1511 = vadd.f32 %v1026, %v1437
      %v1512 = vadd.f32 %v1031, %v1442
      %v1513 = vadd.f32 %v1036, %v1447
      %v1514 = vadd.f32 %v1041, %v1452
      %v1515 = vadd.f32 %v1046, %v1457
      %v1516 = vadd.f32 %v1051, %v1462
      %v1517 = vadd.f32 %v1056, %v1467
      %v1518 = vadd.f32 %v1061, %v1472
      %v1519 = vadd.f32 %v1066, %v1477
      %v1520 = vadd.f32 %v1071, %v1482
      %v1521 = vadd.f32 %v1076, %v1487
      %v1522 = vld [vmem:[%s2] sm:$0x1]
      %v1524 = vlaneseq
      %v1525 = vshrl.u32 %v1524, 7
      %v1526 = vsub.s32 0, %v1525
      %v1527 = vrot.slane %v1522, %v1526
      %v1529 = vadd.f32 %v1490, %v1527
      %v1530 = vadd.f32 %v1491, %v1527
      %v1531 = vadd.f32 %v1492, %v1527
      %v1532 = vadd.f32 %v1493, %v1527
      %v1533 = vadd.f32 %v1494, %v1527
      %v1534 = vadd.f32 %v1495, %v1527
      %v1535 = vadd.f32 %v1496, %v1527
      %v1536 = vadd.f32 %v1497, %v1527
      %v1537 = vadd.f32 %v1498, %v1527
      %v1538 = vadd.f32 %v1499, %v1527
      %v1539 = vadd.f32 %v1500, %v1527
      %v1540 = vadd.f32 %v1501, %v1527
      %v1541 = vadd.f32 %v1502, %v1527
      %v1542 = vadd.f32 %v1503, %v1527
      %v1543 = vadd.f32 %v1504, %v1527
      %v1544 = vadd.f32 %v1505, %v1527
      %v1545 = vadd.f32 %v1506, %v1527
      %v1546 = vadd.f32 %v1507, %v1527
      %v1547 = vadd.f32 %v1508, %v1527
      %v1548 = vadd.f32 %v1509, %v1527
      %v1549 = vadd.f32 %v1510, %v1527
      %v1550 = vadd.f32 %v1511, %v1527
      %v1551 = vadd.f32 %v1512, %v1527
      %v1552 = vadd.f32 %v1513, %v1527
      %v1553 = vadd.f32 %v1514, %v1527
      %v1554 = vadd.f32 %v1515, %v1527
      %v1555 = vadd.f32 %v1516, %v1527
      %v1556 = vadd.f32 %v1517, %v1527
      %v1557 = vadd.f32 %v1518, %v1527
      %v1558 = vadd.f32 %v1519, %v1527
      %v1559 = vadd.f32 %v1520, %v1527
      %v1560 = vadd.f32 %v1521, %v1527
      %vm1561 = vcmp.ge.f32.partialorder %v1529, 0.0
      %vm1562 = vcmp.ge.f32.partialorder %v1530, 0.0
      %vm1563 = vcmp.ge.f32.partialorder %v1531, 0.0
      %vm1564 = vcmp.ge.f32.partialorder %v1532, 0.0
      %vm1565 = vcmp.ge.f32.partialorder %v1533, 0.0
      %vm1566 = vcmp.ge.f32.partialorder %v1534, 0.0
      %vm1567 = vcmp.ge.f32.partialorder %v1535, 0.0
      %vm1568 = vcmp.ge.f32.partialorder %v1536, 0.0
      %vm1569 = vcmp.ge.f32.partialorder %v1537, 0.0
      %vm1570 = vcmp.ge.f32.partialorder %v1538, 0.0
      %vm1571 = vcmp.ge.f32.partialorder %v1539, 0.0
      %vm1572 = vcmp.ge.f32.partialorder %v1540, 0.0
      %vm1573 = vcmp.ge.f32.partialorder %v1541, 0.0
      %vm1574 = vcmp.ge.f32.partialorder %v1542, 0.0
      %vm1575 = vcmp.ge.f32.partialorder %v1543, 0.0
      %vm1576 = vcmp.ge.f32.partialorder %v1544, 0.0
      %vm1577 = vcmp.ge.f32.partialorder %v1545, 0.0
      %vm1578 = vcmp.ge.f32.partialorder %v1546, 0.0
      %vm1579 = vcmp.ge.f32.partialorder %v1547, 0.0
      %vm1580 = vcmp.ge.f32.partialorder %v1548, 0.0
      %vm1581 = vcmp.ge.f32.partialorder %v1549, 0.0
      %vm1582 = vcmp.ge.f32.partialorder %v1550, 0.0
      %vm1583 = vcmp.ge.f32.partialorder %v1551, 0.0
      %vm1584 = vcmp.ge.f32.partialorder %v1552, 0.0
      %vm1585 = vcmp.ge.f32.partialorder %v1553, 0.0
      %vm1586 = vcmp.ge.f32.partialorder %v1554, 0.0
      %vm1587 = vcmp.ge.f32.partialorder %v1555, 0.0
      %vm1588 = vcmp.ge.f32.partialorder %v1556, 0.0
      %vm1589 = vcmp.ge.f32.partialorder %v1557, 0.0
      %vm1590 = vcmp.ge.f32.partialorder %v1558, 0.0
      %vm1591 = vcmp.ge.f32.partialorder %v1559, 0.0
      %vm1592 = vcmp.ge.f32.partialorder %v1560, 0.0
      %v1593 = vmul.f32 %v1529, 0.1
      %v1594 = vmul.f32 %v1530, 0.1
      %v1595 = vmul.f32 %v1531, 0.1
      %v1596 = vmul.f32 %v1532, 0.1
      %v1597 = vmul.f32 %v1533, 0.1
      %v1598 = vmul.f32 %v1534, 0.1
      %v1599 = vmul.f32 %v1535, 0.1
      %v1600 = vmul.f32 %v1536, 0.1
      %v1601 = vmul.f32 %v1537, 0.1
      %v1602 = vmul.f32 %v1538, 0.1
      %v1603 = vmul.f32 %v1539, 0.1
      %v1604 = vmul.f32 %v1540, 0.1
      %v1605 = vmul.f32 %v1541, 0.1
      %v1606 = vmul.f32 %v1542, 0.1
      %v1607 = vmul.f32 %v1543, 0.1
      %v1608 = vmul.f32 %v1544, 0.1
      %v1609 = vmul.f32 %v1545, 0.1
      %v1610 = vmul.f32 %v1546, 0.1
      %v1611 = vmul.f32 %v1547, 0.1
      %v1612 = vmul.f32 %v1548, 0.1
      %v1613 = vmul.f32 %v1549, 0.1
      %v1614 = vmul.f32 %v1550, 0.1
      %v1615 = vmul.f32 %v1551, 0.1
      %v1616 = vmul.f32 %v1552, 0.1
      %v1617 = vmul.f32 %v1553, 0.1
      %v1618 = vmul.f32 %v1554, 0.1
      %v1619 = vmul.f32 %v1555, 0.1
      %v1620 = vmul.f32 %v1556, 0.1
      %v1621 = vmul.f32 %v1557, 0.1
      %v1622 = vmul.f32 %v1558, 0.1
      %v1623 = vmul.f32 %v1559, 0.1
      %v1624 = vmul.f32 %v1560, 0.1
      %v1625 = vsel %vm1561, %v1529, %v1593
      %v1626 = vsel %vm1562, %v1530, %v1594
      %v1627 = vsel %vm1563, %v1531, %v1595
      %v1628 = vsel %vm1564, %v1532, %v1596
      %v1629 = vsel %vm1565, %v1533, %v1597
      %v1630 = vsel %vm1566, %v1534, %v1598
      %v1631 = vsel %vm1567, %v1535, %v1599
      %v1632 = vsel %vm1568, %v1536, %v1600
      %v1633 = vsel %vm1569, %v1537, %v1601
      %v1634 = vsel %vm1570, %v1538, %v1602
      %v1635 = vsel %vm1571, %v1539, %v1603
      %v1636 = vsel %vm1572, %v1540, %v1604
      %v1637 = vsel %vm1573, %v1541, %v1605
      %v1638 = vsel %vm1574, %v1542, %v1606
      %v1639 = vsel %vm1575, %v1543, %v1607
      %v1640 = vsel %vm1576, %v1544, %v1608
      %v1641 = vsel %vm1577, %v1545, %v1609
      %v1642 = vsel %vm1578, %v1546, %v1610
      %v1643 = vsel %vm1579, %v1547, %v1611
      %v1644 = vsel %vm1580, %v1548, %v1612
      %v1645 = vsel %vm1581, %v1549, %v1613
      %v1646 = vsel %vm1582, %v1550, %v1614
      %v1647 = vsel %vm1583, %v1551, %v1615
      %v1648 = vsel %vm1584, %v1552, %v1616
      %v1649 = vsel %vm1585, %v1553, %v1617
      %v1650 = vsel %vm1586, %v1554, %v1618
      %v1651 = vsel %vm1587, %v1555, %v1619
      %v1652 = vsel %vm1588, %v1556, %v1620
      %v1653 = vsel %vm1589, %v1557, %v1621
      %v1654 = vsel %vm1590, %v1558, %v1622
      %v1655 = vsel %vm1591, %v1559, %v1623
      %v1656 = vsel %vm1592, %v1560, %v1624
      %1657 = vst [vmem:[%s248] sm:$0xff] %v1625
      %1658 = vst [vmem:[%s248 + $0x8] sm:$0xff] %v1626
      %1659 = vst [vmem:[%s248 + $0x10] sm:$0xff] %v1627
      %1660 = vst [vmem:[%s248 + $0x18] sm:$0xff] %v1628
      %1661 = vst [vmem:[%s248 + $0x20] sm:$0xff] %v1629
      %1662 = vst [vmem:[%s248 + $0x28] sm:$0xff] %v1630
      %1663 = vst [vmem:[%s248 + $0x30] sm:$0xff] %v1631
      %1664 = vst [vmem:[%s248 + $0x38] sm:$0xff] %v1632
      %1665 = vst [vmem:[%s248 + $0x40] sm:$0xff] %v1633
      %1666 = vst [vmem:[%s248 + $0x48] sm:$0xff] %v1634
      %1667 = vst [vmem:[%s248 + $0x50] sm:$0xff] %v1635
      %1668 = vst [vmem:[%s248 + $0x58] sm:$0xff] %v1636
      %1669 = vst [vmem:[%s248 + $0x60] sm:$0xff] %v1637
      %1670 = vst [vmem:[%s248 + $0x68] sm:$0xff] %v1638
      %1671 = vst [vmem:[%s248 + $0x70] sm:$0xff] %v1639
      %1672 = vst [vmem:[%s248 + $0x78] sm:$0xff] %v1640
      %1673 = vst [vmem:[%s248 + $0x80] sm:$0xff] %v1641
      %1674 = vst [vmem:[%s248 + $0x88] sm:$0xff] %v1642
      %1675 = vst [vmem:[%s248 + $0x90] sm:$0xff] %v1643
      %1676 = vst [vmem:[%s248 + $0x98] sm:$0xff] %v1644
      %1677 = vst [vmem:[%s248 + $0xa0] sm:$0xff] %v1645
      %1678 = vst [vmem:[%s248 + $0xa8] sm:$0xff] %v1646
      %1679 = vst [vmem:[%s248 + $0xb0] sm:$0xff] %v1647
      %1680 = vst [vmem:[%s248 + $0xb8] sm:$0xff] %v1648
      %1681 = vst [vmem:[%s248 + $0xc0] sm:$0xff] %v1649
      %1682 = vst [vmem:[%s248 + $0xc8] sm:$0xff] %v1650
      %1683 = vst [vmem:[%s248 + $0xd0] sm:$0xff] %v1651
      %1684 = vst [vmem:[%s248 + $0xd8] sm:$0xff] %v1652
      %1685 = vst [vmem:[%s248 + $0xe0] sm:$0xff] %v1653
      %1686 = vst [vmem:[%s248 + $0xe8] sm:$0xff] %v1654
      %1687 = vst [vmem:[%s248 + $0xf0] sm:$0xff] %v1655
      %1688 = vst [vmem:[%s248 + $0xf8] sm:$0xff] %v1656
      %v1689 = vadd.f32 %v1625, %v1626
      %v1690 = vadd.f32 %v1689, %v1627
      %v1691 = vadd.f32 %v1690, %v1628
      %v1692 = vadd.f32 %v1691, %v1629
      %v1693 = vadd.f32 %v1692, %v1630
      %v1694 = vadd.f32 %v1693, %v1631
      %v1695 = vadd.f32 %v1694, %v1632
      %v1696 = vadd.f32 %v1695, %v1633
      %v1697 = vadd.f32 %v1696, %v1634
      %v1698 = vadd.f32 %v1697, %v1635
      %v1699 = vadd.f32 %v1698, %v1636
      %v1700 = vadd.f32 %v1699, %v1637
      %v1701 = vadd.f32 %v1700, %v1638
      %v1702 = vadd.f32 %v1701, %v1639
      %v1703 = vadd.f32 %v1702, %v1640
      %v1704 = vadd.f32 %v1703, %v1641
      %v1705 = vadd.f32 %v1704, %v1642
      %v1706 = vadd.f32 %v1705, %v1643
      %v1707 = vadd.f32 %v1706, %v1644
      %v1708 = vadd.f32 %v1707, %v1645
      %v1709 = vadd.f32 %v1708, %v1646
      %v1710 = vadd.f32 %v1709, %v1647
      %v1711 = vadd.f32 %v1710, %v1648
      %v1712 = vadd.f32 %v1711, %v1649
      %v1713 = vadd.f32 %v1712, %v1650
      %v1714 = vadd.f32 %v1713, %v1651
      %v1715 = vadd.f32 %v1714, %v1652
      %v1716 = vadd.f32 %v1715, %v1653
      %v1717 = vadd.f32 %v1716, %v1654
      %v1718 = vadd.f32 %v1717, %v1655
      %v1719 = vadd.f32 %v1718, %v1656
      %v1720 = vrot.slane %v1719, 4
      %v1721 = vadd.f32 %v1719, %v1720
      %v1722 = vrot.slane %v1721, 2
      %v1723 = vadd.f32 %v1721, %v1722
      %v1724 = vrot.slane %v1723, 1
      %v1725 = vadd.f32 %v1723, %v1724
      %v1726 = vmul.f32 %v1625, %v1625
      %v1727 = vmul.f32 %v1626, %v1626
      %v1728 = vmul.f32 %v1627, %v1627
      %v1729 = vmul.f32 %v1628, %v1628
      %v1730 = vmul.f32 %v1629, %v1629
      %v1731 = vmul.f32 %v1630, %v1630
      %v1732 = vmul.f32 %v1631, %v1631
      %v1733 = vmul.f32 %v1632, %v1632
      %v1734 = vmul.f32 %v1633, %v1633
      %v1735 = vmul.f32 %v1634, %v1634
      %v1736 = vmul.f32 %v1635, %v1635
      %v1737 = vmul.f32 %v1636, %v1636
      %v1738 = vmul.f32 %v1637, %v1637
      %v1739 = vmul.f32 %v1638, %v1638
      %v1740 = vmul.f32 %v1639, %v1639
      %v1741 = vmul.f32 %v1640, %v1640
      %v1742 = vmul.f32 %v1641, %v1641
      %v1743 = vmul.f32 %v1642, %v1642
      %v1744 = vmul.f32 %v1643, %v1643
      %v1745 = vmul.f32 %v1644, %v1644
      %v1746 = vmul.f32 %v1645, %v1645
      %v1747 = vmul.f32 %v1646, %v1646
      %v1748 = vmul.f32 %v1647, %v1647
      %v1749 = vmul.f32 %v1648, %v1648
      %v1750 = vmul.f32 %v1649, %v1649
      %v1751 = vmul.f32 %v1650, %v1650
      %v1752 = vmul.f32 %v1651, %v1651
      %v1753 = vmul.f32 %v1652, %v1652
      %v1754 = vmul.f32 %v1653, %v1653
      %v1755 = vmul.f32 %v1654, %v1654
      %v1756 = vmul.f32 %v1655, %v1655
      %v1757 = vmul.f32 %v1656, %v1656
      %v1758 = vadd.f32 %v1726, %v1727
      %v1759 = vadd.f32 %v1758, %v1728
      %v1760 = vadd.f32 %v1759, %v1729
      %v1761 = vadd.f32 %v1760, %v1730
      %v1762 = vadd.f32 %v1761, %v1731
      %v1763 = vadd.f32 %v1762, %v1732
      %v1764 = vadd.f32 %v1763, %v1733
      %v1765 = vadd.f32 %v1764, %v1734
      %v1766 = vadd.f32 %v1765, %v1735
      %v1767 = vadd.f32 %v1766, %v1736
      %v1768 = vadd.f32 %v1767, %v1737
      %v1769 = vadd.f32 %v1768, %v1738
      %v1770 = vadd.f32 %v1769, %v1739
      %v1771 = vadd.f32 %v1770, %v1740
      %v1772 = vadd.f32 %v1771, %v1741
      %v1773 = vadd.f32 %v1772, %v1742
      %v1774 = vadd.f32 %v1773, %v1743
      %v1775 = vadd.f32 %v1774, %v1744
      %v1776 = vadd.f32 %v1775, %v1745
      %v1777 = vadd.f32 %v1776, %v1746
      %v1778 = vadd.f32 %v1777, %v1747
      %v1779 = vadd.f32 %v1778, %v1748
      %v1780 = vadd.f32 %v1779, %v1749
      %v1781 = vadd.f32 %v1780, %v1750
      %v1782 = vadd.f32 %v1781, %v1751
      %v1783 = vadd.f32 %v1782, %v1752
      %v1784 = vadd.f32 %v1783, %v1753
      %v1785 = vadd.f32 %v1784, %v1754
      %v1786 = vadd.f32 %v1785, %v1755
      %v1787 = vadd.f32 %v1786, %v1756
      %v1788 = vadd.f32 %v1787, %v1757
      %v1789 = vrot.slane %v1788, 4
      %v1790 = vadd.f32 %v1788, %v1789
      %v1791 = vrot.slane %v1790, 2
      %v1792 = vadd.f32 %v1790, %v1791
      %v1793 = vrot.slane %v1792, 1
      %v1794 = vadd.f32 %v1792, %v1793
      %v1797 = vcombine.low %v1725, %v1794
      %v1799 = vunpack.c.l.s4 1966171168
      %v1800 = vunpack.c.0.s8 %v1799
      %v1801 = vlaneseq
      %v1802 = vshrl.u32 %v1801, 7
      %v1803 = vsub.s32 %v1800, %v1802
      %v1804 = vrot.slane %v1797, %v1803
      %v1806 = vunpack.c.l.s4 1966171168
      %v1807 = vunpack.c.0.s8 %v1806
      %v1808 = vlaneseq
      %v1809 = vshrl.u32 %v1808, 7
      %v1810 = vsub.s32 %v1807, %v1809
      %v1811 = vrot.slane %v1804, %v1810
      %v1813 = vlaneseq
      %vm1814 = vcmp.ge.s32.totalorder %v1813, 0
      %vm1815 = vcmp.lt.s32.totalorder %v1813, 256
      %vm1816 = vmand %vm1814, %vm1815
      %1817 = vst.msk [vmem:[%s257] sm:$0x3] %vm1816, %v1811
      %s1818 = smul.u32 16, %s21
      %p1819 = scmp.lt.s32.totalorder %s20, 1
      %s1820 = scalar_select %p1819, %s20, 1
      %p1821 = scmp.lt.s32.totalorder %s1818, 31
      %s1822 = scalar_select %p1821, %s1818, 31
      %s1823 = smul.addr %s1822, 2
      %s1824 = smul.addr %s1820, 64
      %s1825 = sadd.s32 %s1823, %s1824
      %s1826 = smul.addr %s1825, 8
      %s1827 = scalar_lea.vmem %s3, %s1826
      %p1828 = scmp.lt.s32.totalorder %s20, 1
      %s1829 = scalar_select %p1828, %s20, 1
      %p1830 = scmp.lt.s32.totalorder %s21, 1
      %s1831 = scalar_select %p1830, %s21, 1
      %s1832 = smul.addr %s1831, 2
      %s1833 = smul.addr %s1829, 4
      %s1834 = sadd.s32 %s1832, %s1833
      %s1835 = scalar_lea.vmem %s4, %s1834
      // Predicated region
      $region33: #{residual_conv_forward.2} parent=31 // pred_check
        %p1836 = pneg %p120
      $region34: #{residual_conv_forward.2} parent=31 // pred_check_branch
        %1838 = sbr.rel (%p1836) target = $region36
      $region35: #{residual_conv_forward.2} parent=31 // pred_region
        %s1839 = smul.u32 16, %s21
      $region36: #{residual_conv_forward.2} parent=31 // pred_fallthru
        _
      // Predicated region
      $region37: #{residual_conv_forward.2} parent=31 // pred_check
        %p1840 = pneg %p148
      $region38: #{residual_conv_forward.2} parent=31 // pred_check_branch
        %1842 = sbr.rel (%p1840) target = $region40
      $region39: #{residual_conv_forward.2} parent=31 // pred_region
        _
      $region40: #{residual_conv_forward.2} parent=31 // pred_fallthru
        _
    $region32: #{residual_conv_forward.2} parent=5 // pred_fallthru
      _
    %p1843 = scmp.le.s32.totalorder 2, %s11
    // Predicated region
    $region41: #{residual_conv_forward.2} parent=5 // pred_check
      %p1844 = pneg %p1843
    $region42: #{residual_conv_forward.2} parent=5 // pred_check_branch
      %1846 = sbr.rel (%p1844) target = $region44
    $region43: #{residual_conv_forward.2} parent=5 // pred_region
      %s1847 = ssub.s32 %s11, 2
      // Predicated region
      $region45: #{residual_conv_forward.2} parent=43 // pred_check
        %p1848 = pneg %p126
      $region46: #{residual_conv_forward.2} parent=43 // pred_check_branch
        %1850 = sbr.rel (%p1848) target = $region48
      $region47: #{residual_conv_forward.2} parent=43 // pred_region
        %s1851 = smul.u32 16, %s23
        %p1852 = scmp.lt.s32.totalorder %s22, 1
        %s1853 = scalar_select %p1852, %s22, 1
        %p1854 = scmp.lt.s32.totalorder %s1851, 31
        %s1855 = scalar_select %p1854, %s1851, 31
        %s1856 = smul.addr %s1855, 2
        %s1857 = smul.addr %s1853, 64
        %s1858 = sadd.s32 %s1856, %s1857
        %s1859 = smul.addr %s1858, 8
        %s1860 = scalar_lea.vmem %s3, %s1859
      $region48: #{residual_conv_forward.2} parent=43 // pred_fallthru
        _
      // Predicated region
      $region49: #{residual_conv_forward.2} parent=43 // pred_check
        %p1861 = pneg %p154
      $region50: #{residual_conv_forward.2} parent=43 // pred_check_branch
        %1863 = sbr.rel (%p1861) target = $region52
      $region51: #{residual_conv_forward.2} parent=43 // pred_region
        %p1864 = scmp.lt.s32.totalorder %s22, 1
        %s1865 = scalar_select %p1864, %s22, 1
        %p1866 = scmp.lt.s32.totalorder %s23, 1
        %s1867 = scalar_select %p1866, %s23, 1
        %s1868 = smul.addr %s1867, 2
        %s1869 = smul.addr %s1865, 4
        %s1870 = sadd.s32 %s1868, %s1869
        %s1871 = scalar_lea.vmem %s4, %s1870
      $region52: #{residual_conv_forward.2} parent=43 // pred_fallthru
        _
    $region44: #{residual_conv_forward.2} parent=5 // pred_fallthru
      _
  $region6: #{residual_conv_forward.2} parent=0 // loop_footer
    %s15 = sadd.s32 1, %s11
  $region7: #{residual_conv_forward.2} parent=0 // loop_footer_branch
    %10 = sbr.rel target = $region3
  $region8: #{residual_conv_forward.2} parent=0 // loop_exit
    _

</llo_original>
